<compile_context>
chip_gen: v5e
topology: v5e:2x2
jax: 0.10.0
libtpu: 0.0.40
codegen_flags: <defaults>
</compile_context>

<pallas_src>
import functools

import jax
import jax.numpy as jnp
from jax.experimental import pallas as pl
from jax.experimental.pallas import tpu as pltpu


# ---------------------------------------------------------------- kernel ----
def attention_kernel(x_ref, wqkv_ref, woh_ref, bo_ref, o_ref, *,
                     batch, seq, heads, dim_head):
    bn = batch * seq                                   # flattened token rows
    inner = heads * dim_head

    # --- to_qkv (no bias); bf16 operands, f32 accumulation on the MXU ---
    x = x_ref[...].astype(jnp.bfloat16)                # (B*N, D)
    qkv = jnp.dot(x, wqkv_ref[...],
                  preferred_element_type=jnp.float32)  # (B*N, 3*inner) f32

    # 128-lane-aligned feature slices (inner is a multiple of 128)
    q = qkv[:, 0 * inner:1 * inner]
    k = qkv[:, 1 * inner:2 * inner]
    v = qkv[:, 2 * inner:3 * inner]

    # (B*N, H*dh) -> (H, B*N, dh) -> (H*B, N, dh): one small transpose, then
    # pure (contiguous) reshapes; group index g = h*B + b keeps batches isolated.
    def split_heads(t):
        t = t.astype(jnp.bfloat16).reshape(bn, heads, dim_head)
        t = jnp.transpose(t, (1, 0, 2))                # (H, B*N, dh)
        return t.reshape(heads * batch, seq, dim_head) # (H*B, N, dh)

    qh, kh, vh = split_heads(q), split_heads(k), split_heads(v)

    # --- scaled dot-product attention (scale already folded into wqkv Q cols) ---
    s = jnp.einsum('gnd,gmd->gnm', qh, kh,
                   preferred_element_type=jnp.float32)           # (H*B, N, N)
    s = s - jnp.max(s, axis=-1, keepdims=True)
    p = jnp.exp(s)
    p = p * pl.reciprocal(jnp.sum(p, axis=-1, keepdims=True), approx=True)

    oh = jnp.einsum('gnm,gmd->gnd', p.astype(jnp.bfloat16), vh,
                    preferred_element_type=jnp.float32)          # (H*B, N, dh)

    # --- to_out fused with head-merge: per-head matmul against wo(H,dh,D), sum over H ---
    oh = oh.reshape(heads, bn, dim_head).astype(jnp.bfloat16)    # free reshape (g = h*B + b)
    out_h = jnp.einsum('hmd,hdD->hmD', oh, woh_ref[...],
                       preferred_element_type=jnp.float32)       # (H, B*N, D)
    out = jnp.sum(out_h, axis=0) + bo_ref[...]                   # (B*N, D) + (1, D)
    o_ref[...] = out.astype(o_ref.dtype)


# ---------------------------------------------------------------- wrapper ----
def run_attention(x, wqkv, wo, bo, heads, dim_head):
    bsz, n_tok, d = x.shape
    inner = heads * dim_head
    scale = dim_head ** -0.5   # 2**-3 for dim_head=64 -> exact in bf16

    # One-time weight prep (outside the kernel): fold scale into Q columns,
    # cast weights to bf16, reshape wo for the fused per-head projection.
    wqkv_bf = wqkv.at[:, :inner].multiply(scale).astype(jnp.bfloat16)   # (D, 3*inner)
    wo_h = wo.reshape(heads, dim_head, d).astype(jnp.bfloat16)          # (H, dh, D)
    x2 = x.reshape(bsz * n_tok, d)                                      # (B*N, D)

    kern = functools.partial(attention_kernel, batch=bsz, seq=n_tok,
                             heads=heads, dim_head=dim_head)

    vmem = pl.BlockSpec(memory_space=pltpu.MemorySpace.VMEM)
    out = pl.pallas_call(
        kern,
        out_shape=jax.ShapeDtypeStruct((bsz * n_tok, d), x.dtype),
        in_specs=[vmem, vmem, vmem, vmem],   # x2, wqkv_bf, wo_h, bo — full arrays in VMEM
        out_specs=vmem,
    )(x2, wqkv_bf, wo_h, bo)
    return out.reshape(bsz, n_tok, d)


# ---------------------------------------------------------------- reference ----
def attention_reference(x, wqkv, wo, bo, heads, dim_head):
    """Pure-JAX f32 reference matching the PyTorch Attention.forward."""
    B, N, D = x.shape
    inner = heads * dim_head
    qkv = x @ wqkv                                        # (B, N, 3*inner)
    q, k, v = jnp.split(qkv, 3, axis=-1)

    def split_heads(t):
        return jnp.transpose(t.reshape(B, N, heads, dim_head), (0, 2, 1, 3))

    q, k, v = map(split_heads, (q, k, v))                 # (B, H, N, dh)
    dots = jnp.einsum('bhnd,bhmd->bhnm', q, k) * (dim_head ** -0.5)
    attn = jax.nn.softmax(dots, axis=-1)
    out = jnp.einsum('bhnm,bhmd->bhnd', attn, v)
    out = jnp.transpose(out, (0, 2, 1, 3)).reshape(B, N, inner)
    return out @ wo + bo


# ---------------------------------------------------------------- main ----
if __name__ == "__main__":
    # Small shapes consistent with the module (defaults heads=8, dim_head=64);
    # dim=128 keeps activations/outputs lane-dense.
    B, N, dim = 2, 8, 128
    heads, dim_head = 8, 64
    inner = heads * dim_head          # 512

    key = jax.random.PRNGKey(0)
    kx, kqkv, kwo, kbo = jax.random.split(key, 4)
    x = jax.random.normal(kx, (B, N, dim), dtype=jnp.float32)
    wqkv = (jax.random.normal(kqkv, (dim, 3 * inner)) / jnp.sqrt(dim)).astype(jnp.float32)
    wo = (jax.random.normal(kwo, (inner, dim)) / jnp.sqrt(inner)).astype(jnp.float32)
    bo = (0.1 * jax.random.normal(kbo, (1, dim))).astype(jnp.float32)

    out = run_attention(x, wqkv, wo, bo, heads, dim_head)
    out = jax.block_until_ready(out)

    ref = attention_reference(x, wqkv, wo, bo, heads, dim_head)

    assert out.shape == (B, N, dim), out.shape
    assert bool(jnp.all(jnp.isfinite(out)))
    rel_err = float(jnp.max(jnp.abs(out - ref)) / (jnp.max(jnp.abs(ref)) + 1e-6))
    assert rel_err < 3e-2, f"relative error too high: {rel_err}"
    print("KERNEL_OK")
</pallas_src>

<mosaic_0001>
module attributes {stable_mosaic.version = 11 : i64} {
  func.func @attention_kernel(%arg0: memref<16x128xf32, #tpu.memory_space<vmem>>, %arg1: memref<128x1536xbf16, #tpu.memory_space<vmem>>, %arg2: memref<8x64x128xbf16, #tpu.memory_space<vmem>>, %arg3: memref<1x128xf32, #tpu.memory_space<vmem>>, %arg4: memref<16x128xf32, #tpu.memory_space<vmem>>) attributes {dimension_semantics = [], scalar_prefetch = 0 : i64, scratch_operands = 0 : i64, tpu.core_type = #tpu.core_type<tc>} {
    %c0 = arith.constant 0 : index
    %c0_0 = arith.constant 0 : index
    %0 = vector.load %arg0[%c0, %c0_0] : memref<16x128xf32, #tpu.memory_space<vmem>>, vector<16x128xf32>
    %1 = arith.truncf %0 : vector<16x128xf32> to vector<16x128xbf16>
    %c0_1 = arith.constant 0 : index
    %c0_2 = arith.constant 0 : index
    %2 = vector.load %arg1[%c0_1, %c0_2] : memref<128x1536xbf16, #tpu.memory_space<vmem>>, vector<128x1536xbf16>
    %cst = arith.constant dense<0.000000e+00> : vector<16x1536xf32>
    %3 = tpu.matmul %1, %2, %cst {dimension_numbers = #tpu.dot_dimension_numbers<[1], [0], [0], [1], [0, 0, 1, 1], [], []>} : vector<16x128xbf16>, vector<128x1536xbf16>, vector<16x1536xf32> -> vector<16x1536xf32>
    %4 = vector.extract_strided_slice %3 {offsets = [0, 0], sizes = [16, 512], strides = [1, 1]} : vector<16x1536xf32> to vector<16x512xf32>
    %5 = vector.extract_strided_slice %3 {offsets = [0, 512], sizes = [16, 512], strides = [1, 1]} : vector<16x1536xf32> to vector<16x512xf32>
    %6 = vector.extract_strided_slice %3 {offsets = [0, 1024], sizes = [16, 512], strides = [1, 1]} : vector<16x1536xf32> to vector<16x512xf32>
    %7 = arith.truncf %4 : vector<16x512xf32> to vector<16x512xbf16>
    %8 = vector.shape_cast %7 : vector<16x512xbf16> to vector<16x8x64xbf16>
    %9 = tpu.transpose %8, [1, 0, 2] : vector<16x8x64xbf16> -> vector<8x16x64xbf16>
    %10 = vector.shape_cast %9 : vector<8x16x64xbf16> to vector<16x8x64xbf16>
    %11 = arith.truncf %5 : vector<16x512xf32> to vector<16x512xbf16>
    %12 = vector.shape_cast %11 : vector<16x512xbf16> to vector<16x8x64xbf16>
    %13 = tpu.transpose %12, [1, 0, 2] : vector<16x8x64xbf16> -> vector<8x16x64xbf16>
    %14 = vector.shape_cast %13 : vector<8x16x64xbf16> to vector<16x8x64xbf16>
    %15 = arith.truncf %6 : vector<16x512xf32> to vector<16x512xbf16>
    %16 = vector.shape_cast %15 : vector<16x512xbf16> to vector<16x8x64xbf16>
    %17 = tpu.transpose %16, [1, 0, 2] : vector<16x8x64xbf16> -> vector<8x16x64xbf16>
    %18 = vector.shape_cast %17 : vector<8x16x64xbf16> to vector<16x8x64xbf16>
    "tpu.trace_start"() <{level = 10 : i32, message = "gnd,gmd->gnm"}> : () -> ()
    %cst_3 = arith.constant dense<0.000000e+00> : vector<16x8x8xf32>
    %19 = tpu.matmul %10, %14, %cst_3 {dimension_numbers = #tpu.dot_dimension_numbers<[2], [2], [1], [1], [0, 0, 0, 1, 1, 1], [0], [0]>} : vector<16x8x64xbf16>, vector<16x8x64xbf16>, vector<16x8x8xf32> -> vector<16x8x8xf32>
    "tpu.trace_stop"() : () -> ()
    %cst_4 = arith.constant dense<0xFF800000> : vector<16x8xf32>
    %20 = vector.multi_reduction <maximumf>, %19, %cst_4 [2] : vector<16x8x8xf32> to vector<16x8xf32>
    %21 = vector.shape_cast %20 : vector<16x8xf32> to vector<16x8x1xf32>
    %22 = vector.broadcast %21 : vector<16x8x1xf32> to vector<16x8x8xf32>
    %23 = arith.subf %19, %22 : vector<16x8x8xf32>
    %24 = math.exp %23 : vector<16x8x8xf32>
    %cst_5 = arith.constant dense<0.000000e+00> : vector<16x8xf32>
    %25 = vector.multi_reduction <add>, %24, %cst_5 [2] : vector<16x8x8xf32> to vector<16x8xf32>
    %26 = vector.shape_cast %25 : vector<16x8xf32> to vector<16x8x1xf32>
    %27 = tpu.reciprocal %26 {approx = true} : vector<16x8x1xf32> -> vector<16x8x1xf32>
    %28 = vector.broadcast %27 : vector<16x8x1xf32> to vector<16x8x8xf32>
    %29 = arith.mulf %24, %28 : vector<16x8x8xf32>
    %30 = arith.truncf %29 : vector<16x8x8xf32> to vector<16x8x8xbf16>
    "tpu.trace_start"() <{level = 10 : i32, message = "gnm,gmd->gnd"}> : () -> ()
    %cst_6 = arith.constant dense<0.000000e+00> : vector<16x8x64xf32>
    %31 = tpu.matmul %30, %18, %cst_6 {dimension_numbers = #tpu.dot_dimension_numbers<[2], [1], [1], [2], [0, 0, 0, 1, 1, 2], [0], [0]>} : vector<16x8x8xbf16>, vector<16x8x64xbf16>, vector<16x8x64xf32> -> vector<16x8x64xf32>
    "tpu.trace_stop"() : () -> ()
    %32 = vector.shape_cast %31 : vector<16x8x64xf32> to vector<8x16x64xf32>
    %33 = arith.truncf %32 : vector<8x16x64xf32> to vector<8x16x64xbf16>
    %c0_7 = arith.constant 0 : index
    %c0_8 = arith.constant 0 : index
    %c0_9 = arith.constant 0 : index
    %34 = vector.load %arg2[%c0_7, %c0_8, %c0_9] : memref<8x64x128xbf16, #tpu.memory_space<vmem>>, vector<8x64x128xbf16>
    "tpu.trace_start"() <{level = 10 : i32, message = "hmd,hdD->hmD"}> : () -> ()
    %cst_10 = arith.constant dense<0.000000e+00> : vector<8x16x128xf32>
    %35 = tpu.matmul %33, %34, %cst_10 {dimension_numbers = #tpu.dot_dimension_numbers<[2], [1], [1], [2], [0, 0, 0, 1, 1, 2], [0], [0]>} : vector<8x16x64xbf16>, vector<8x64x128xbf16>, vector<8x16x128xf32> -> vector<8x16x128xf32>
    "tpu.trace_stop"() : () -> ()
    %cst_11 = arith.constant dense<0.000000e+00> : vector<16x128xf32>
    %36 = vector.multi_reduction <add>, %35, %cst_11 [0] : vector<8x16x128xf32> to vector<16x128xf32>
    %c0_12 = arith.constant 0 : index
    %c0_13 = arith.constant 0 : index
    %37 = vector.load %arg3[%c0_12, %c0_13] : memref<1x128xf32, #tpu.memory_space<vmem>>, vector<1x128xf32>
    %38 = vector.broadcast %37 : vector<1x128xf32> to vector<16x128xf32>
    %39 = arith.addf %36, %38 : vector<16x128xf32>
    %c0_14 = arith.constant 0 : index
    %c0_15 = arith.constant 0 : index
    %40 = vector.load %arg4[%c0_14, %c0_15] : memref<16x128xf32, #tpu.memory_space<vmem>>, vector<16x128xf32>
    tpu.vector_store %arg4[%c0_14, %c0_15], %39 {strides = array<i32>} : memref<16x128xf32, #tpu.memory_space<vmem>>, vector<16x128xf32>,
    return
  }
}

</mosaic_0001>

<llo_original>
// kernel: tpu_custom_call.1
$region0: #{tpu_custom_call.1}
  #allocation0 [shape = 'u32[]', space=smem, size = 0x4, offset = 0x4, fixed_abs, tag = 'smem constant byte address 0x4 - core index']
  #allocation1 [shape = 'u32[72,128]{1,0:T(1,128)}', space=vmem, size = 0x9000, scoped, tag = 'internal scratch']
  %s0 = inlined_call_operand.hbm [shape: f32[16,128], index: 0, kind: input, shape index: {}]
  %s1 = inlined_call_operand.hbm [shape: bf16[128,1536], index: 1, kind: input, shape index: {}]
  %s2 = inlined_call_operand.hbm [shape: bf16[8,64,128], index: 2, kind: input, shape index: {}]
  %s3 = inlined_call_operand.vmem [shape: f32[1,128], index: 3, kind: input, shape index: {}]
  %s4 = inlined_call_operand.hbm [shape: f32[16,128], index: 4, kind: output, shape index: {}]
  %s5 = sld [smem:[#allocation0]]
  $region38: #{tpu_custom_call.1} parent=0
    _
  %s7 = ssub.s32 1, %s5
  %s8 = scalar_select 0, %s7, %s5
  $region1: #{tpu_custom_call.1} parent=0
    #allocation2 [shape = 'u8[8192]{0}', space=vmem, size = 0x2000, scoped, tag = 'input window, operand 0, single buffered']
    #allocation3 [shape = 's32[1]{0}', space=sflag, size = 0x4, scoped, tag = 'scoped memory for tpu_custom_call.1']
    #allocation4 [shape = 's32[1]{0}', space=sflag, size = 0x4, scoped, tag = 'scoped memory for tpu_custom_call.1']
    #allocation5 [shape = 'u8[393216]{0}', space=vmem, size = 0x60000, scoped, tag = 'input window, operand 1, single buffered']
    #allocation6 [shape = 's32[1]{0}', space=sflag, size = 0x4, scoped, tag = 'scoped memory for tpu_custom_call.1']
    #allocation7 [shape = 'u8[131072]{0}', space=vmem, size = 0x20000, scoped, tag = 'input window, operand 2, single buffered']
    #allocation8 [shape = 'u8[8192]{0}', space=vmem, size = 0x2000, scoped, tag = 'output window, operand 0, single buffered']
    %9 = vsyncpa [#allocation3], 0
    %10 = vsyncpa [#allocation6], 0
    %11 = vsyncpa [#allocation4], 0
    // Predicated region
    $region2: #{tpu_custom_call.1} parent=1 // pred_check
      _
    $region3: #{tpu_custom_call.1} parent=1 // pred_check_branch
      %13 = sbr.rel (0) target = $region5
    $region4: #{tpu_custom_call.1} parent=1 // pred_region
      %15 = vsyncadd [#allocation3], 0
      %s16 = sshll.u32 %s0, 4
      %s17 = int_to_ptr.hbm [resolvable:$true] %s16
      %s18 = sshll.u32 [#allocation2], 4
      %s19 = int_to_ptr.vmem [resolvable:$true] %s18
      %24 = dma.hbm_to_vmem [thread:$0]  %s17, 256, %s19, [#allocation3], 128, 128, 8
    $region5: #{tpu_custom_call.1} parent=1 // pred_fallthru
      _
    // Predicated region
    $region6: #{tpu_custom_call.1} parent=1 // pred_check
      _
    $region7: #{tpu_custom_call.1} parent=1 // pred_check_branch
      %26 = sbr.rel (0) target = $region9
    $region8: #{tpu_custom_call.1} parent=1 // pred_region
      %28 = vsyncadd [#allocation6], 0
      %s29 = sshll.u32 %s1, 4
      %s30 = int_to_ptr.hbm [resolvable:$true] %s29
      %s31 = sshll.u32 [#allocation5], 4
      %s32 = int_to_ptr.vmem [resolvable:$true] %s31
      %37 = dma.hbm_to_vmem [thread:$0]  %s30, 12288, %s32, [#allocation6], 768, 768, 48
    $region9: #{tpu_custom_call.1} parent=1 // pred_fallthru
      _
    // Predicated region
    $region10: #{tpu_custom_call.1} parent=1 // pred_check
      _
    $region11: #{tpu_custom_call.1} parent=1 // pred_check_branch
      %39 = sbr.rel (0) target = $region13
    $region12: #{tpu_custom_call.1} parent=1 // pred_region
      %41 = vsyncadd [#allocation6], 0
      %s42 = sshll.u32 %s2, 4
      %s43 = int_to_ptr.hbm [resolvable:$true] %s42
      %s44 = sshll.u32 [#allocation7], 4
      %s45 = int_to_ptr.vmem [resolvable:$true] %s44
      %50 = dma.hbm_to_vmem [thread:$0]  %s43, 4096, %s45, [#allocation6], 64, 64, 4
    $region13: #{tpu_custom_call.1} parent=1 // pred_fallthru
      _
    // Predicated region
    $region14: #{tpu_custom_call.1} parent=1 // pred_check
      _
    $region15: #{tpu_custom_call.1} parent=1 // pred_check_branch
      %52 = sbr.rel (0) target = $region17
    $region16: #{tpu_custom_call.1} parent=1 // pred_region
      _
    $region17: #{tpu_custom_call.1} parent=1 // pred_fallthru
      _
    // Predicated region
    $region18: #{tpu_custom_call.1} parent=1 // pred_check
      _
    $region19: #{tpu_custom_call.1} parent=1 // pred_check_branch
      %54 = sbr.rel (0) target = $region21
    $region20: #{tpu_custom_call.1} parent=1 // pred_region
      %56 = dma.done [#allocation3], 256
    $region21: #{tpu_custom_call.1} parent=1 // pred_fallthru
      _
    // Predicated region
    $region22: #{tpu_custom_call.1} parent=1 // pred_check
      _
    $region23: #{tpu_custom_call.1} parent=1 // pred_check_branch
      %58 = sbr.rel (0) target = $region25
    $region24: #{tpu_custom_call.1} parent=1 // pred_region
      %60 = dma.done [#allocation6], 12288
    $region25: #{tpu_custom_call.1} parent=1 // pred_fallthru
      _
    // Predicated region
    $region26: #{tpu_custom_call.1} parent=1 // pred_check
      _
    $region27: #{tpu_custom_call.1} parent=1 // pred_check_branch
      %62 = sbr.rel (0) target = $region29
    $region28: #{tpu_custom_call.1} parent=1 // pred_region
      %64 = dma.done [#allocation6], 4096
    $region29: #{tpu_custom_call.1} parent=1 // pred_fallthru
      _
    %v66 = vld [vmem:[#allocation2] sm:$0xff]
    %v67 = vld [vmem:[#allocation2 + $0x8] sm:$0xff]
    %v68 = vpack.c.bf16 %v67, %v66
    %v69 = vld [vmem:[#allocation5] sm:$0xff]
    %v70 = vld [vmem:[#allocation5 + $0x8] sm:$0xff]
    %v71 = vld [vmem:[#allocation5 + $0x10] sm:$0xff]
    %v72 = vld [vmem:[#allocation5 + $0x18] sm:$0xff]
    %v73 = vld [vmem:[#allocation5 + $0x20] sm:$0xff]
    %v74 = vld [vmem:[#allocation5 + $0x28] sm:$0xff]
    %v75 = vld [vmem:[#allocation5 + $0x30] sm:$0xff]
    %v76 = vld [vmem:[#allocation5 + $0x38] sm:$0xff]
    %v77 = vld [vmem:[#allocation5 + $0x40] sm:$0xff]
    %v78 = vld [vmem:[#allocation5 + $0x48] sm:$0xff]
    %v79 = vld [vmem:[#allocation5 + $0x50] sm:$0xff]
    %v80 = vld [vmem:[#allocation5 + $0x58] sm:$0xff]
    %v81 = vld [vmem:[#allocation5 + $0x60] sm:$0xff]
    %v82 = vld [vmem:[#allocation5 + $0x68] sm:$0xff]
    %v83 = vld [vmem:[#allocation5 + $0x70] sm:$0xff]
    %v84 = vld [vmem:[#allocation5 + $0x78] sm:$0xff]
    %v85 = vld [vmem:[#allocation5 + $0x80] sm:$0xff]
    %v86 = vld [vmem:[#allocation5 + $0x88] sm:$0xff]
    %v87 = vld [vmem:[#allocation5 + $0x90] sm:$0xff]
    %v88 = vld [vmem:[#allocation5 + $0x98] sm:$0xff]
    %v89 = vld [vmem:[#allocation5 + $0xa0] sm:$0xff]
    %v90 = vld [vmem:[#allocation5 + $0xa8] sm:$0xff]
    %v91 = vld [vmem:[#allocation5 + $0xb0] sm:$0xff]
    %v92 = vld [vmem:[#allocation5 + $0xb8] sm:$0xff]
    %v93 = vld [vmem:[#allocation5 + $0xc0] sm:$0xff]
    %v94 = vld [vmem:[#allocation5 + $0xc8] sm:$0xff]
    %v95 = vld [vmem:[#allocation5 + $0xd0] sm:$0xff]
    %v96 = vld [vmem:[#allocation5 + $0xd8] sm:$0xff]
    %v97 = vld [vmem:[#allocation5 + $0xe0] sm:$0xff]
    %v98 = vld [vmem:[#allocation5 + $0xe8] sm:$0xff]
    %v99 = vld [vmem:[#allocation5 + $0xf0] sm:$0xff]
    %v100 = vld [vmem:[#allocation5 + $0xf8] sm:$0xff]
    %v101 = vld [vmem:[#allocation5 + $0x100] sm:$0xff]
    %v102 = vld [vmem:[#allocation5 + $0x108] sm:$0xff]
    %v103 = vld [vmem:[#allocation5 + $0x110] sm:$0xff]
    %v104 = vld [vmem:[#allocation5 + $0x118] sm:$0xff]
    %v105 = vld [vmem:[#allocation5 + $0x120] sm:$0xff]
    %v106 = vld [vmem:[#allocation5 + $0x128] sm:$0xff]
    %v107 = vld [vmem:[#allocation5 + $0x130] sm:$0xff]
    %v108 = vld [vmem:[#allocation5 + $0x138] sm:$0xff]
    %v109 = vld [vmem:[#allocation5 + $0x140] sm:$0xff]
    %v110 = vld [vmem:[#allocation5 + $0x148] sm:$0xff]
    %v111 = vld [vmem:[#allocation5 + $0x150] sm:$0xff]
    %v112 = vld [vmem:[#allocation5 + $0x158] sm:$0xff]
    %v113 = vld [vmem:[#allocation5 + $0x160] sm:$0xff]
    %v114 = vld [vmem:[#allocation5 + $0x168] sm:$0xff]
    %v115 = vld [vmem:[#allocation5 + $0x170] sm:$0xff]
    %v116 = vld [vmem:[#allocation5 + $0x178] sm:$0xff]
    %v117 = vld [vmem:[#allocation5 + $0x180] sm:$0xff]
    %v118 = vld [vmem:[#allocation5 + $0x188] sm:$0xff]
    %v119 = vld [vmem:[#allocation5 + $0x190] sm:$0xff]
    %v120 = vld [vmem:[#allocation5 + $0x198] sm:$0xff]
    %v121 = vld [vmem:[#allocation5 + $0x1a0] sm:$0xff]
    %v122 = vld [vmem:[#allocation5 + $0x1a8] sm:$0xff]
    %v123 = vld [vmem:[#allocation5 + $0x1b0] sm:$0xff]
    %v124 = vld [vmem:[#allocation5 + $0x1b8] sm:$0xff]
    %v125 = vld [vmem:[#allocation5 + $0x1c0] sm:$0xff]
    %v126 = vld [vmem:[#allocation5 + $0x1c8] sm:$0xff]
    %v127 = vld [vmem:[#allocation5 + $0x1d0] sm:$0xff]
    %v128 = vld [vmem:[#allocation5 + $0x1d8] sm:$0xff]
    %v129 = vld [vmem:[#allocation5 + $0x1e0] sm:$0xff]
    %v130 = vld [vmem:[#allocation5 + $0x1e8] sm:$0xff]
    %v131 = vld [vmem:[#allocation5 + $0x1f0] sm:$0xff]
    %v132 = vld [vmem:[#allocation5 + $0x1f8] sm:$0xff]
    %v133 = vld [vmem:[#allocation5 + $0x200] sm:$0xff]
    %v134 = vld [vmem:[#allocation5 + $0x208] sm:$0xff]
    %v135 = vld [vmem:[#allocation5 + $0x210] sm:$0xff]
    %v136 = vld [vmem:[#allocation5 + $0x218] sm:$0xff]
    %v137 = vld [vmem:[#allocation5 + $0x220] sm:$0xff]
    %v138 = vld [vmem:[#allocation5 + $0x228] sm:$0xff]
    %v139 = vld [vmem:[#allocation5 + $0x230] sm:$0xff]
    %v140 = vld [vmem:[#allocation5 + $0x238] sm:$0xff]
    %v141 = vld [vmem:[#allocation5 + $0x240] sm:$0xff]
    %v142 = vld [vmem:[#allocation5 + $0x248] sm:$0xff]
    %v143 = vld [vmem:[#allocation5 + $0x250] sm:$0xff]
    %v144 = vld [vmem:[#allocation5 + $0x258] sm:$0xff]
    %v145 = vld [vmem:[#allocation5 + $0x260] sm:$0xff]
    %v146 = vld [vmem:[#allocation5 + $0x268] sm:$0xff]
    %v147 = vld [vmem:[#allocation5 + $0x270] sm:$0xff]
    %v148 = vld [vmem:[#allocation5 + $0x278] sm:$0xff]
    %v149 = vld [vmem:[#allocation5 + $0x280] sm:$0xff]
    %v150 = vld [vmem:[#allocation5 + $0x288] sm:$0xff]
    %v151 = vld [vmem:[#allocation5 + $0x290] sm:$0xff]
    %v152 = vld [vmem:[#allocation5 + $0x298] sm:$0xff]
    %v153 = vld [vmem:[#allocation5 + $0x2a0] sm:$0xff]
    %v154 = vld [vmem:[#allocation5 + $0x2a8] sm:$0xff]
    %v155 = vld [vmem:[#allocation5 + $0x2b0] sm:$0xff]
    %v156 = vld [vmem:[#allocation5 + $0x2b8] sm:$0xff]
    %v157 = vld [vmem:[#allocation5 + $0x2c0] sm:$0xff]
    %v158 = vld [vmem:[#allocation5 + $0x2c8] sm:$0xff]
    %v159 = vld [vmem:[#allocation5 + $0x2d0] sm:$0xff]
    %v160 = vld [vmem:[#allocation5 + $0x2d8] sm:$0xff]
    %v161 = vld [vmem:[#allocation5 + $0x2e0] sm:$0xff]
    %v162 = vld [vmem:[#allocation5 + $0x2e8] sm:$0xff]
    %v163 = vld [vmem:[#allocation5 + $0x2f0] sm:$0xff]
    %v164 = vld [vmem:[#allocation5 + $0x2f8] sm:$0xff]
    %v261 = vunpack.c.l.b16 %v69
    %v262 = vunpack.c.h.b16 %v69
    %v263 = vunpack.c.l.b16 %v70
    %v264 = vunpack.c.h.b16 %v70
    %v265 = vunpack.c.l.b16 %v71
    %v266 = vunpack.c.h.b16 %v71
    %v267 = vunpack.c.l.b16 %v72
    %v268 = vunpack.c.h.b16 %v72
    %v269 = vunpack.c.l.b16 %v73
    %v270 = vunpack.c.h.b16 %v73
    %v271 = vunpack.c.l.b16 %v74
    %v272 = vunpack.c.h.b16 %v74
    %v273 = vunpack.c.l.b16 %v75
    %v274 = vunpack.c.h.b16 %v75
    %v275 = vunpack.c.l.b16 %v76
    %v276 = vunpack.c.h.b16 %v76
    %v277 = vunpack.c.l.b16 %v77
    %v278 = vunpack.c.h.b16 %v77
    %v279 = vunpack.c.l.b16 %v78
    %v280 = vunpack.c.h.b16 %v78
    %v281 = vunpack.c.l.b16 %v79
    %v282 = vunpack.c.h.b16 %v79
    %v283 = vunpack.c.l.b16 %v80
    %v284 = vunpack.c.h.b16 %v80
    %v285 = vunpack.c.l.b16 %v81
    %v286 = vunpack.c.h.b16 %v81
    %v287 = vunpack.c.l.b16 %v82
    %v288 = vunpack.c.h.b16 %v82
    %v289 = vunpack.c.l.b16 %v83
    %v290 = vunpack.c.h.b16 %v83
    %v291 = vunpack.c.l.b16 %v84
    %v292 = vunpack.c.h.b16 %v84
    %v293 = vunpack.c.l.b16 %v85
    %v294 = vunpack.c.h.b16 %v85
    %v295 = vunpack.c.l.b16 %v86
    %v296 = vunpack.c.h.b16 %v86
    %v297 = vunpack.c.l.b16 %v87
    %v298 = vunpack.c.h.b16 %v87
    %v299 = vunpack.c.l.b16 %v88
    %v300 = vunpack.c.h.b16 %v88
    %v301 = vunpack.c.l.b16 %v89
    %v302 = vunpack.c.h.b16 %v89
    %v303 = vunpack.c.l.b16 %v90
    %v304 = vunpack.c.h.b16 %v90
    %v305 = vunpack.c.l.b16 %v91
    %v306 = vunpack.c.h.b16 %v91
    %v307 = vunpack.c.l.b16 %v92
    %v308 = vunpack.c.h.b16 %v92
    %v309 = vunpack.c.l.b16 %v93
    %v310 = vunpack.c.h.b16 %v93
    %v311 = vunpack.c.l.b16 %v94
    %v312 = vunpack.c.h.b16 %v94
    %v313 = vunpack.c.l.b16 %v95
    %v314 = vunpack.c.h.b16 %v95
    %v315 = vunpack.c.l.b16 %v96
    %v316 = vunpack.c.h.b16 %v96
    %v317 = vunpack.c.l.b16 %v97
    %v318 = vunpack.c.h.b16 %v97
    %v319 = vunpack.c.l.b16 %v98
    %v320 = vunpack.c.h.b16 %v98
    %v321 = vunpack.c.l.b16 %v99
    %v322 = vunpack.c.h.b16 %v99
    %v323 = vunpack.c.l.b16 %v100
    %v324 = vunpack.c.h.b16 %v100
    %v325 = vunpack.c.l.b16 %v101
    %v326 = vunpack.c.h.b16 %v101
    %v327 = vunpack.c.l.b16 %v102
    %v328 = vunpack.c.h.b16 %v102
    %v329 = vunpack.c.l.b16 %v103
    %v330 = vunpack.c.h.b16 %v103
    %v331 = vunpack.c.l.b16 %v104
    %v332 = vunpack.c.h.b16 %v104
    %v333 = vunpack.c.l.b16 %v105
    %v334 = vunpack.c.h.b16 %v105
    %v335 = vunpack.c.l.b16 %v106
    %v336 = vunpack.c.h.b16 %v106
    %v337 = vunpack.c.l.b16 %v107
    %v338 = vunpack.c.h.b16 %v107
    %v339 = vunpack.c.l.b16 %v108
    %v340 = vunpack.c.h.b16 %v108
    %v341 = vunpack.c.l.b16 %v109
    %v342 = vunpack.c.h.b16 %v109
    %v343 = vunpack.c.l.b16 %v110
    %v344 = vunpack.c.h.b16 %v110
    %v345 = vunpack.c.l.b16 %v111
    %v346 = vunpack.c.h.b16 %v111
    %v347 = vunpack.c.l.b16 %v112
    %v348 = vunpack.c.h.b16 %v112
    %v349 = vunpack.c.l.b16 %v113
    %v350 = vunpack.c.h.b16 %v113
    %v351 = vunpack.c.l.b16 %v114
    %v352 = vunpack.c.h.b16 %v114
    %v353 = vunpack.c.l.b16 %v115
    %v354 = vunpack.c.h.b16 %v115
    %v355 = vunpack.c.l.b16 %v116
    %v356 = vunpack.c.h.b16 %v116
    %v357 = vunpack.c.l.b16 %v117
    %v358 = vunpack.c.h.b16 %v117
    %v359 = vunpack.c.l.b16 %v118
    %v360 = vunpack.c.h.b16 %v118
    %v361 = vunpack.c.l.b16 %v119
    %v362 = vunpack.c.h.b16 %v119
    %v363 = vunpack.c.l.b16 %v120
    %v364 = vunpack.c.h.b16 %v120
    %v365 = vunpack.c.l.b16 %v121
    %v366 = vunpack.c.h.b16 %v121
    %v367 = vunpack.c.l.b16 %v122
    %v368 = vunpack.c.h.b16 %v122
    %v369 = vunpack.c.l.b16 %v123
    %v370 = vunpack.c.h.b16 %v123
    %v371 = vunpack.c.l.b16 %v124
    %v372 = vunpack.c.h.b16 %v124
    %v373 = vunpack.c.l.b16 %v125
    %v374 = vunpack.c.h.b16 %v125
    %v375 = vunpack.c.l.b16 %v126
    %v376 = vunpack.c.h.b16 %v126
    %v377 = vunpack.c.l.b16 %v127
    %v378 = vunpack.c.h.b16 %v127
    %v379 = vunpack.c.l.b16 %v128
    %v380 = vunpack.c.h.b16 %v128
    %v381 = vunpack.c.l.b16 %v129
    %v382 = vunpack.c.h.b16 %v129
    %v383 = vunpack.c.l.b16 %v130
    %v384 = vunpack.c.h.b16 %v130
    %v385 = vunpack.c.l.b16 %v131
    %v386 = vunpack.c.h.b16 %v131
    %v387 = vunpack.c.l.b16 %v132
    %v388 = vunpack.c.h.b16 %v132
    %v389 = vunpack.c.l.b16 %v133
    %v390 = vunpack.c.h.b16 %v133
    %v391 = vunpack.c.l.b16 %v134
    %v392 = vunpack.c.h.b16 %v134
    %v393 = vunpack.c.l.b16 %v135
    %v394 = vunpack.c.h.b16 %v135
    %v395 = vunpack.c.l.b16 %v136
    %v396 = vunpack.c.h.b16 %v136
    %v397 = vunpack.c.l.b16 %v137
    %v398 = vunpack.c.h.b16 %v137
    %v399 = vunpack.c.l.b16 %v138
    %v400 = vunpack.c.h.b16 %v138
    %v401 = vunpack.c.l.b16 %v139
    %v402 = vunpack.c.h.b16 %v139
    %v403 = vunpack.c.l.b16 %v140
    %v404 = vunpack.c.h.b16 %v140
    %v405 = vunpack.c.l.b16 %v141
    %v406 = vunpack.c.h.b16 %v141
    %v407 = vunpack.c.l.b16 %v142
    %v408 = vunpack.c.h.b16 %v142
    %v409 = vunpack.c.l.b16 %v143
    %v410 = vunpack.c.h.b16 %v143
    %v411 = vunpack.c.l.b16 %v144
    %v412 = vunpack.c.h.b16 %v144
    %v413 = vunpack.c.l.b16 %v145
    %v414 = vunpack.c.h.b16 %v145
    %v415 = vunpack.c.l.b16 %v146
    %v416 = vunpack.c.h.b16 %v146
    %v417 = vunpack.c.l.b16 %v147
    %v418 = vunpack.c.h.b16 %v147
    %v419 = vunpack.c.l.b16 %v148
    %v420 = vunpack.c.h.b16 %v148
    %v421 = vunpack.c.l.b16 %v149
    %v422 = vunpack.c.h.b16 %v149
    %v423 = vunpack.c.l.b16 %v150
    %v424 = vunpack.c.h.b16 %v150
    %v425 = vunpack.c.l.b16 %v151
    %v426 = vunpack.c.h.b16 %v151
    %v427 = vunpack.c.l.b16 %v152
    %v428 = vunpack.c.h.b16 %v152
    %v429 = vunpack.c.l.b16 %v153
    %v430 = vunpack.c.h.b16 %v153
    %v431 = vunpack.c.l.b16 %v154
    %v432 = vunpack.c.h.b16 %v154
    %v433 = vunpack.c.l.b16 %v155
    %v434 = vunpack.c.h.b16 %v155
    %v435 = vunpack.c.l.b16 %v156
    %v436 = vunpack.c.h.b16 %v156
    %v437 = vunpack.c.l.b16 %v157
    %v438 = vunpack.c.h.b16 %v157
    %v439 = vunpack.c.l.b16 %v158
    %v440 = vunpack.c.h.b16 %v158
    %v441 = vunpack.c.l.b16 %v159
    %v442 = vunpack.c.h.b16 %v159
    %v443 = vunpack.c.l.b16 %v160
    %v444 = vunpack.c.h.b16 %v160
    %v445 = vunpack.c.l.b16 %v161
    %v446 = vunpack.c.h.b16 %v161
    %v447 = vunpack.c.l.b16 %v162
    %v448 = vunpack.c.h.b16 %v162
    %v449 = vunpack.c.l.b16 %v163
    %v450 = vunpack.c.h.b16 %v163
    %v451 = vunpack.c.l.b16 %v164
    %v452 = vunpack.c.h.b16 %v164
    %v453 = vpack.c.b16 %v273, %v261
    %v454 = vpack.c.b16 %v274, %v262
    %v455 = vpack.c.b16 %v275, %v263
    %v456 = vpack.c.b16 %v276, %v264
    %v457 = vpack.c.b16 %v277, %v265
    %v458 = vpack.c.b16 %v278, %v266
    %v459 = vpack.c.b16 %v279, %v267
    %v460 = vpack.c.b16 %v280, %v268
    %v461 = vpack.c.b16 %v281, %v269
    %v462 = vpack.c.b16 %v282, %v270
    %v463 = vpack.c.b16 %v283, %v271
    %v464 = vpack.c.b16 %v284, %v272
    %v465 = vpack.c.b16 %v297, %v285
    %v466 = vpack.c.b16 %v298, %v286
    %v467 = vpack.c.b16 %v299, %v287
    %v468 = vpack.c.b16 %v300, %v288
    %v469 = vpack.c.b16 %v301, %v289
    %v470 = vpack.c.b16 %v302, %v290
    %v471 = vpack.c.b16 %v303, %v291
    %v472 = vpack.c.b16 %v304, %v292
    %v473 = vpack.c.b16 %v305, %v293
    %v474 = vpack.c.b16 %v306, %v294
    %v475 = vpack.c.b16 %v307, %v295
    %v476 = vpack.c.b16 %v308, %v296
    %v477 = vpack.c.b16 %v321, %v309
    %v478 = vpack.c.b16 %v322, %v310
    %v479 = vpack.c.b16 %v323, %v311
    %v480 = vpack.c.b16 %v324, %v312
    %v481 = vpack.c.b16 %v325, %v313
    %v482 = vpack.c.b16 %v326, %v314
    %v483 = vpack.c.b16 %v327, %v315
    %v484 = vpack.c.b16 %v328, %v316
    %v485 = vpack.c.b16 %v329, %v317
    %v486 = vpack.c.b16 %v330, %v318
    %v487 = vpack.c.b16 %v331, %v319
    %v488 = vpack.c.b16 %v332, %v320
    %v489 = vpack.c.b16 %v345, %v333
    %v490 = vpack.c.b16 %v346, %v334
    %v491 = vpack.c.b16 %v347, %v335
    %v492 = vpack.c.b16 %v348, %v336
    %v493 = vpack.c.b16 %v349, %v337
    %v494 = vpack.c.b16 %v350, %v338
    %v495 = vpack.c.b16 %v351, %v339
    %v496 = vpack.c.b16 %v352, %v340
    %v497 = vpack.c.b16 %v353, %v341
    %v498 = vpack.c.b16 %v354, %v342
    %v499 = vpack.c.b16 %v355, %v343
    %v500 = vpack.c.b16 %v356, %v344
    %v501 = vpack.c.b16 %v369, %v357
    %v502 = vpack.c.b16 %v370, %v358
    %v503 = vpack.c.b16 %v371, %v359
    %v504 = vpack.c.b16 %v372, %v360
    %v505 = vpack.c.b16 %v373, %v361
    %v506 = vpack.c.b16 %v374, %v362
    %v507 = vpack.c.b16 %v375, %v363
    %v508 = vpack.c.b16 %v376, %v364
    %v509 = vpack.c.b16 %v377, %v365
    %v510 = vpack.c.b16 %v378, %v366
    %v511 = vpack.c.b16 %v379, %v367
    %v512 = vpack.c.b16 %v380, %v368
    %v513 = vpack.c.b16 %v393, %v381
    %v514 = vpack.c.b16 %v394, %v382
    %v515 = vpack.c.b16 %v395, %v383
    %v516 = vpack.c.b16 %v396, %v384
    %v517 = vpack.c.b16 %v397, %v385
    %v518 = vpack.c.b16 %v398, %v386
    %v519 = vpack.c.b16 %v399, %v387
    %v520 = vpack.c.b16 %v400, %v388
    %v521 = vpack.c.b16 %v401, %v389
    %v522 = vpack.c.b16 %v402, %v390
    %v523 = vpack.c.b16 %v403, %v391
    %v524 = vpack.c.b16 %v404, %v392
    %v525 = vpack.c.b16 %v417, %v405
    %v526 = vpack.c.b16 %v418, %v406
    %v527 = vpack.c.b16 %v419, %v407
    %v528 = vpack.c.b16 %v420, %v408
    %v529 = vpack.c.b16 %v421, %v409
    %v530 = vpack.c.b16 %v422, %v410
    %v531 = vpack.c.b16 %v423, %v411
    %v532 = vpack.c.b16 %v424, %v412
    %v533 = vpack.c.b16 %v425, %v413
    %v534 = vpack.c.b16 %v426, %v414
    %v535 = vpack.c.b16 %v427, %v415
    %v536 = vpack.c.b16 %v428, %v416
    %v537 = vpack.c.b16 %v441, %v429
    %v538 = vpack.c.b16 %v442, %v430
    %v539 = vpack.c.b16 %v443, %v431
    %v540 = vpack.c.b16 %v444, %v432
    %v541 = vpack.c.b16 %v445, %v433
    %v542 = vpack.c.b16 %v446, %v434
    %v543 = vpack.c.b16 %v447, %v435
    %v544 = vpack.c.b16 %v448, %v436
    %v545 = vpack.c.b16 %v449, %v437
    %v546 = vpack.c.b16 %v450, %v438
    %v547 = vpack.c.b16 %v451, %v439
    %v548 = vpack.c.b16 %v452, %v440
    %645 = vmatpush.bf16.msra.mxu0 %v537
    %646 = vmatpush.bf16.msra.mxu0 %v525
    %647 = vmatpush.bf16.msra.mxu0 %v513
    %648 = vmatpush.bf16.msra.mxu0 %v501
    %649 = vmatpush.bf16.msra.mxu0 %v489
    %650 = vmatpush.bf16.msra.mxu0 %v477
    %651 = vmatpush.bf16.msra.mxu0 %v465
    %652 = vmatpush.bf16.msra.mxu0 %v453
    %653 = vmatmul.bf16.gmra.mxu0 %v68
    %v654 = vpop.f32.mrf.mxu0
    %v655 = vadd.f32 0.0, %v654
    %v656 = vpop.f32.mrf.mxu0
    %v657 = vadd.f32 0.0, %v656
    %658 = vdwg.mxu0
    %659 = vmatpush.bf16.msra.mxu0 %v538
    %660 = vmatpush.bf16.msra.mxu0 %v526
    %661 = vmatpush.bf16.msra.mxu0 %v514
    %662 = vmatpush.bf16.msra.mxu0 %v502
    %663 = vmatpush.bf16.msra.mxu0 %v490
    %664 = vmatpush.bf16.msra.mxu0 %v478
    %665 = vmatpush.bf16.msra.mxu0 %v466
    %666 = vmatpush.bf16.msra.mxu0 %v454
    %667 = vmatmul.bf16.gmra.mxu0 %v68
    %v668 = vpop.f32.mrf.mxu0
    %v669 = vadd.f32 0.0, %v668
    %v670 = vpop.f32.mrf.mxu0
    %v671 = vadd.f32 0.0, %v670
    %672 = vdwg.mxu0
    %673 = vmatpush.bf16.msra.mxu0 %v539
    %674 = vmatpush.bf16.msra.mxu0 %v527
    %675 = vmatpush.bf16.msra.mxu0 %v515
    %676 = vmatpush.bf16.msra.mxu0 %v503
    %677 = vmatpush.bf16.msra.mxu0 %v491
    %678 = vmatpush.bf16.msra.mxu0 %v479
    %679 = vmatpush.bf16.msra.mxu0 %v467
    %680 = vmatpush.bf16.msra.mxu0 %v455
    %681 = vmatmul.bf16.gmra.mxu0 %v68
    %v682 = vpop.f32.mrf.mxu0
    %v683 = vadd.f32 0.0, %v682
    %v684 = vpop.f32.mrf.mxu0
    %v685 = vadd.f32 0.0, %v684
    %686 = vdwg.mxu0
    %687 = vmatpush.bf16.msra.mxu0 %v540
    %688 = vmatpush.bf16.msra.mxu0 %v528
    %689 = vmatpush.bf16.msra.mxu0 %v516
    %690 = vmatpush.bf16.msra.mxu0 %v504
    %691 = vmatpush.bf16.msra.mxu0 %v492
    %692 = vmatpush.bf16.msra.mxu0 %v480
    %693 = vmatpush.bf16.msra.mxu0 %v468
    %694 = vmatpush.bf16.msra.mxu0 %v456
    %695 = vmatmul.bf16.gmra.mxu0 %v68
    %v696 = vpop.f32.mrf.mxu0
    %v697 = vadd.f32 0.0, %v696
    %v698 = vpop.f32.mrf.mxu0
    %v699 = vadd.f32 0.0, %v698
    %700 = vdwg.mxu0
    %701 = vmatpush.bf16.msra.mxu0 %v541
    %702 = vmatpush.bf16.msra.mxu0 %v529
    %703 = vmatpush.bf16.msra.mxu0 %v517
    %704 = vmatpush.bf16.msra.mxu0 %v505
    %705 = vmatpush.bf16.msra.mxu0 %v493
    %706 = vmatpush.bf16.msra.mxu0 %v481
    %707 = vmatpush.bf16.msra.mxu0 %v469
    %708 = vmatpush.bf16.msra.mxu0 %v457
    %709 = vmatmul.bf16.gmra.mxu0 %v68
    %v710 = vpop.f32.mrf.mxu0
    %v711 = vadd.f32 0.0, %v710
    %v712 = vpop.f32.mrf.mxu0
    %v713 = vadd.f32 0.0, %v712
    %714 = vdwg.mxu0
    %715 = vmatpush.bf16.msra.mxu0 %v542
    %716 = vmatpush.bf16.msra.mxu0 %v530
    %717 = vmatpush.bf16.msra.mxu0 %v518
    %718 = vmatpush.bf16.msra.mxu0 %v506
    %719 = vmatpush.bf16.msra.mxu0 %v494
    %720 = vmatpush.bf16.msra.mxu0 %v482
    %721 = vmatpush.bf16.msra.mxu0 %v470
    %722 = vmatpush.bf16.msra.mxu0 %v458
    %723 = vmatmul.bf16.gmra.mxu0 %v68
    %v724 = vpop.f32.mrf.mxu0
    %v725 = vadd.f32 0.0, %v724
    %v726 = vpop.f32.mrf.mxu0
    %v727 = vadd.f32 0.0, %v726
    %728 = vdwg.mxu0
    %729 = vmatpush.bf16.msra.mxu0 %v543
    %730 = vmatpush.bf16.msra.mxu0 %v531
    %731 = vmatpush.bf16.msra.mxu0 %v519
    %732 = vmatpush.bf16.msra.mxu0 %v507
    %733 = vmatpush.bf16.msra.mxu0 %v495
    %734 = vmatpush.bf16.msra.mxu0 %v483
    %735 = vmatpush.bf16.msra.mxu0 %v471
    %736 = vmatpush.bf16.msra.mxu0 %v459
    %737 = vmatmul.bf16.gmra.mxu0 %v68
    %v738 = vpop.f32.mrf.mxu0
    %v739 = vadd.f32 0.0, %v738
    %v740 = vpop.f32.mrf.mxu0
    %v741 = vadd.f32 0.0, %v740
    %742 = vdwg.mxu0
    %743 = vmatpush.bf16.msra.mxu0 %v544
    %744 = vmatpush.bf16.msra.mxu0 %v532
    %745 = vmatpush.bf16.msra.mxu0 %v520
    %746 = vmatpush.bf16.msra.mxu0 %v508
    %747 = vmatpush.bf16.msra.mxu0 %v496
    %748 = vmatpush.bf16.msra.mxu0 %v484
    %749 = vmatpush.bf16.msra.mxu0 %v472
    %750 = vmatpush.bf16.msra.mxu0 %v460
    %751 = vmatmul.bf16.gmra.mxu0 %v68
    %v752 = vpop.f32.mrf.mxu0
    %v753 = vadd.f32 0.0, %v752
    %v754 = vpop.f32.mrf.mxu0
    %v755 = vadd.f32 0.0, %v754
    %756 = vdwg.mxu0
    %757 = vmatpush.bf16.msra.mxu0 %v545
    %758 = vmatpush.bf16.msra.mxu0 %v533
    %759 = vmatpush.bf16.msra.mxu0 %v521
    %760 = vmatpush.bf16.msra.mxu0 %v509
    %761 = vmatpush.bf16.msra.mxu0 %v497
    %762 = vmatpush.bf16.msra.mxu0 %v485
    %763 = vmatpush.bf16.msra.mxu0 %v473
    %764 = vmatpush.bf16.msra.mxu0 %v461
    %765 = vmatmul.bf16.gmra.mxu0 %v68
    %v766 = vpop.f32.mrf.mxu0
    %v767 = vadd.f32 0.0, %v766
    %v768 = vpop.f32.mrf.mxu0
    %v769 = vadd.f32 0.0, %v768
    %770 = vdwg.mxu0
    %771 = vmatpush.bf16.msra.mxu0 %v546
    %772 = vmatpush.bf16.msra.mxu0 %v534
    %773 = vmatpush.bf16.msra.mxu0 %v522
    %774 = vmatpush.bf16.msra.mxu0 %v510
    %775 = vmatpush.bf16.msra.mxu0 %v498
    %776 = vmatpush.bf16.msra.mxu0 %v486
    %777 = vmatpush.bf16.msra.mxu0 %v474
    %778 = vmatpush.bf16.msra.mxu0 %v462
    %779 = vmatmul.bf16.gmra.mxu0 %v68
    %v780 = vpop.f32.mrf.mxu0
    %v781 = vadd.f32 0.0, %v780
    %v782 = vpop.f32.mrf.mxu0
    %v783 = vadd.f32 0.0, %v782
    %784 = vdwg.mxu0
    %785 = vmatpush.bf16.msra.mxu0 %v547
    %786 = vmatpush.bf16.msra.mxu0 %v535
    %787 = vmatpush.bf16.msra.mxu0 %v523
    %788 = vmatpush.bf16.msra.mxu0 %v511
    %789 = vmatpush.bf16.msra.mxu0 %v499
    %790 = vmatpush.bf16.msra.mxu0 %v487
    %791 = vmatpush.bf16.msra.mxu0 %v475
    %792 = vmatpush.bf16.msra.mxu0 %v463
    %793 = vmatmul.bf16.gmra.mxu0 %v68
    %v794 = vpop.f32.mrf.mxu0
    %v795 = vadd.f32 0.0, %v794
    %v796 = vpop.f32.mrf.mxu0
    %v797 = vadd.f32 0.0, %v796
    %798 = vdwg.mxu0
    %799 = vmatpush.bf16.msra.mxu0 %v548
    %800 = vmatpush.bf16.msra.mxu0 %v536
    %801 = vmatpush.bf16.msra.mxu0 %v524
    %802 = vmatpush.bf16.msra.mxu0 %v512
    %803 = vmatpush.bf16.msra.mxu0 %v500
    %804 = vmatpush.bf16.msra.mxu0 %v488
    %805 = vmatpush.bf16.msra.mxu0 %v476
    %806 = vmatpush.bf16.msra.mxu0 %v464
    %807 = vmatmul.bf16.gmra.mxu0 %v68
    %v808 = vpop.f32.mrf.mxu0
    %v809 = vadd.f32 0.0, %v808
    %v810 = vpop.f32.mrf.mxu0
    %v811 = vadd.f32 0.0, %v810
    %812 = vdwg.mxu0
    %v813 = vpack.c.bf16 %v669, %v655
    %v814 = vpack.c.bf16 %v697, %v683
    %v815 = vpack.c.bf16 %v671, %v657
    %v816 = vpack.c.bf16 %v699, %v685
    %v819 = vrot.slane %v813, 4
    %v820 = vrot.slane %v815, 4
    %823 = vrot.lane.b32.xlu0 %v813, 64
    %v824 = vpop.permute.xlu0 %823
    %825 = vrot.lane.b32.xlu0 %v815, 64
    %v826 = vpop.permute.xlu0 %825
    %v827 = vrot.slane %v824, 4
    %v828 = vrot.slane %v826, 4
    %v833 = vrot.slane %v814, 4
    %v834 = vrot.slane %v816, 4
    %837 = vrot.lane.b32.xlu0 %v814, 64
    %v838 = vpop.permute.xlu0 %837
    %839 = vrot.lane.b32.xlu0 %v816, 64
    %v840 = vpop.permute.xlu0 %839
    %v841 = vrot.slane %v838, 4
    %v842 = vrot.slane %v840, 4
    %v849 = vrot.slane %v814, 4
    %vm850 = vcmask 1047556
    %v851 = vsel %vm850, %v849, %v813
    %v853 = vunpack.c.l.s4 1983009808
    %v854 = vunpack.c.0.s8 %v853
    %v855 = vperm.slane %v851, %v854
    %v856 = vrot.slane %v833, 4
    %v857 = vsel %vm850, %v856, %v819
    %v859 = vunpack.c.l.s4 1983009808
    %v860 = vunpack.c.0.s8 %v859
    %v861 = vperm.slane %v857, %v860
    %v862 = vrot.slane %v861, 4
    %v863 = vsel %vm850, %v862, %v855
    %v864 = vrot.slane %v855, 4
    %v865 = vsel %vm850, %v861, %v864
    %v867 = vunpack.c.l.s4 1934713408
    %v868 = vunpack.c.0.s8 %v867
    %v869 = vperm.slane %v863, %v868
    %v871 = vunpack.c.l.s4 1934713408
    %v872 = vunpack.c.0.s8 %v871
    %v873 = vperm.slane %v865, %v872
    %v874 = vrot.slane %v869, 4
    %v875 = vsel %vm850, 0, %v874
    %v876 = vrot.slane %v873, 4
    %v877 = vsel %vm850, 0, %v876
    %v878 = vrot.slane %v838, 4
    %v879 = vsel %vm850, %v878, %v824
    %v881 = vunpack.c.l.s4 1983009808
    %v882 = vunpack.c.0.s8 %v881
    %v883 = vperm.slane %v879, %v882
    %v884 = vrot.slane %v841, 4
    %v885 = vsel %vm850, %v884, %v827
    %v887 = vunpack.c.l.s4 1983009808
    %v888 = vunpack.c.0.s8 %v887
    %v889 = vperm.slane %v885, %v888
    %v890 = vrot.slane %v889, 4
    %v891 = vsel %vm850, %v890, %v883
    %v892 = vrot.slane %v883, 4
    %v893 = vsel %vm850, %v889, %v892
    %v895 = vunpack.c.l.s4 1934713408
    %v896 = vunpack.c.0.s8 %v895
    %v897 = vperm.slane %v891, %v896
    %v899 = vunpack.c.l.s4 1934713408
    %v900 = vunpack.c.0.s8 %v899
    %v901 = vperm.slane %v893, %v900
    %v902 = vrot.slane %v897, 4
    %v903 = vsel %vm850, 0, %v902
    %v904 = vrot.slane %v901, 4
    %v905 = vsel %vm850, 0, %v904
    %v906 = vrot.slane %v816, 4
    %v907 = vsel %vm850, %v906, %v815
    %v909 = vunpack.c.l.s4 1983009808
    %v910 = vunpack.c.0.s8 %v909
    %v911 = vperm.slane %v907, %v910
    %v912 = vrot.slane %v834, 4
    %v913 = vsel %vm850, %v912, %v820
    %v915 = vunpack.c.l.s4 1983009808
    %v916 = vunpack.c.0.s8 %v915
    %v917 = vperm.slane %v913, %v916
    %v918 = vrot.slane %v917, 4
    %v919 = vsel %vm850, %v918, %v911
    %v920 = vrot.slane %v911, 4
    %v921 = vsel %vm850, %v917, %v920
    %v923 = vunpack.c.l.s4 1934713408
    %v924 = vunpack.c.0.s8 %v923
    %v925 = vperm.slane %v919, %v924
    %v927 = vunpack.c.l.s4 1934713408
    %v928 = vunpack.c.0.s8 %v927
    %v929 = vperm.slane %v921, %v928
    %v930 = vrot.slane %v925, 4
    %v931 = vsel %vm850, 0, %v930
    %v932 = vrot.slane %v929, 4
    %v933 = vsel %vm850, 0, %v932
    %v934 = vrot.slane %v840, 4
    %v935 = vsel %vm850, %v934, %v826
    %v937 = vunpack.c.l.s4 1983009808
    %v938 = vunpack.c.0.s8 %v937
    %v939 = vperm.slane %v935, %v938
    %v940 = vrot.slane %v842, 4
    %v941 = vsel %vm850, %v940, %v828
    %v943 = vunpack.c.l.s4 1983009808
    %v944 = vunpack.c.0.s8 %v943
    %v945 = vperm.slane %v941, %v944
    %v946 = vrot.slane %v945, 4
    %v947 = vsel %vm850, %v946, %v939
    %v948 = vrot.slane %v939, 4
    %v949 = vsel %vm850, %v945, %v948
    %v951 = vunpack.c.l.s4 1934713408
    %v952 = vunpack.c.0.s8 %v951
    %v953 = vperm.slane %v947, %v952
    %v955 = vunpack.c.l.s4 1934713408
    %v956 = vunpack.c.0.s8 %v955
    %v957 = vperm.slane %v949, %v956
    %v958 = vrot.slane %v953, 4
    %v959 = vsel %vm850, 0, %v958
    %v960 = vrot.slane %v957, 4
    %v961 = vsel %vm850, 0, %v960
    %v964 = vpack.i.b16 %v897, %v869
    %v966 = vshrl.u32 %v869, 16
    %v967 = vshrl.u32 %v897, 16
    %v968 = vpack.i.b16 %v967, %v966
    %v972 = vpack.i.b16 %v903, %v875
    %v974 = vshrl.u32 %v875, 16
    %v975 = vshrl.u32 %v903, 16
    %v976 = vpack.i.b16 %v975, %v974
    %v980 = vpack.i.b16 %v901, %v873
    %v982 = vshrl.u32 %v873, 16
    %v983 = vshrl.u32 %v901, 16
    %v984 = vpack.i.b16 %v983, %v982
    %v988 = vpack.i.b16 %v905, %v877
    %v990 = vshrl.u32 %v877, 16
    %v991 = vshrl.u32 %v905, 16
    %v992 = vpack.i.b16 %v991, %v990
    %v996 = vpack.i.b16 %v953, %v925
    %v998 = vshrl.u32 %v925, 16
    %v999 = vshrl.u32 %v953, 16
    %v1000 = vpack.i.b16 %v999, %v998
    %v1004 = vpack.i.b16 %v959, %v931
    %v1006 = vshrl.u32 %v931, 16
    %v1007 = vshrl.u32 %v959, 16
    %v1008 = vpack.i.b16 %v1007, %v1006
    %v1012 = vpack.i.b16 %v957, %v929
    %v1014 = vshrl.u32 %v929, 16
    %v1015 = vshrl.u32 %v957, 16
    %v1016 = vpack.i.b16 %v1015, %v1014
    %v1020 = vpack.i.b16 %v961, %v933
    %v1022 = vshrl.u32 %v933, 16
    %v1023 = vshrl.u32 %v961, 16
    %v1024 = vpack.i.b16 %v1023, %v1022
    %v1026 = vrot.slane %v980, 4
    %v1027 = vsel %vm850, %v1026, %v964
    %v1029 = vunpack.c.l.s4 1983009808
    %v1030 = vunpack.c.0.s8 %v1029
    %v1031 = vperm.slane %v1027, %v1030
    %v1032 = vrot.slane %v988, 4
    %v1033 = vsel %vm850, %v1032, %v972
    %v1035 = vunpack.c.l.s4 1983009808
    %v1036 = vunpack.c.0.s8 %v1035
    %v1037 = vperm.slane %v1033, %v1036
    %v1038 = vrot.slane %v1037, 4
    %v1039 = vsel %vm850, %v1038, %v1031
    %v1040 = vrot.slane %v1031, 4
    %v1041 = vsel %vm850, %v1037, %v1040
    %v1043 = vunpack.c.l.s4 1934713408
    %v1044 = vunpack.c.0.s8 %v1043
    %v1045 = vperm.slane %v1039, %v1044
    %v1047 = vunpack.c.l.s4 1934713408
    %v1048 = vunpack.c.0.s8 %v1047
    %v1049 = vperm.slane %v1041, %v1048
    %v1050 = vrot.slane %v1045, 4
    %v1051 = vsel %vm850, 0, %v1050
    %v1052 = vrot.slane %v1049, 4
    %v1053 = vsel %vm850, 0, %v1052
    %v1054 = vrot.slane %v984, 4
    %v1055 = vsel %vm850, %v1054, %v968
    %v1057 = vunpack.c.l.s4 1983009808
    %v1058 = vunpack.c.0.s8 %v1057
    %v1059 = vperm.slane %v1055, %v1058
    %v1060 = vrot.slane %v992, 4
    %v1061 = vsel %vm850, %v1060, %v976
    %v1063 = vunpack.c.l.s4 1983009808
    %v1064 = vunpack.c.0.s8 %v1063
    %v1065 = vperm.slane %v1061, %v1064
    %v1066 = vrot.slane %v1065, 4
    %v1067 = vsel %vm850, %v1066, %v1059
    %v1068 = vrot.slane %v1059, 4
    %v1069 = vsel %vm850, %v1065, %v1068
    %v1071 = vunpack.c.l.s4 1934713408
    %v1072 = vunpack.c.0.s8 %v1071
    %v1073 = vperm.slane %v1067, %v1072
    %v1075 = vunpack.c.l.s4 1934713408
    %v1076 = vunpack.c.0.s8 %v1075
    %v1077 = vperm.slane %v1069, %v1076
    %v1078 = vrot.slane %v1073, 4
    %v1079 = vsel %vm850, 0, %v1078
    %v1080 = vrot.slane %v1077, 4
    %v1081 = vsel %vm850, 0, %v1080
    %v1082 = vrot.slane %v1012, 4
    %v1083 = vsel %vm850, %v1082, %v996
    %v1085 = vunpack.c.l.s4 1983009808
    %v1086 = vunpack.c.0.s8 %v1085
    %v1087 = vperm.slane %v1083, %v1086
    %v1088 = vrot.slane %v1020, 4
    %v1089 = vsel %vm850, %v1088, %v1004
    %v1091 = vunpack.c.l.s4 1983009808
    %v1092 = vunpack.c.0.s8 %v1091
    %v1093 = vperm.slane %v1089, %v1092
    %v1094 = vrot.slane %v1093, 4
    %v1095 = vsel %vm850, %v1094, %v1087
    %v1096 = vrot.slane %v1087, 4
    %v1097 = vsel %vm850, %v1093, %v1096
    %v1099 = vunpack.c.l.s4 1934713408
    %v1100 = vunpack.c.0.s8 %v1099
    %v1101 = vperm.slane %v1095, %v1100
    %v1103 = vunpack.c.l.s4 1934713408
    %v1104 = vunpack.c.0.s8 %v1103
    %v1105 = vperm.slane %v1097, %v1104
    %v1106 = vrot.slane %v1101, 4
    %v1107 = vsel %vm850, 0, %v1106
    %v1108 = vrot.slane %v1105, 4
    %v1109 = vsel %vm850, 0, %v1108
    %v1110 = vrot.slane %v1016, 4
    %v1111 = vsel %vm850, %v1110, %v1000
    %v1113 = vunpack.c.l.s4 1983009808
    %v1114 = vunpack.c.0.s8 %v1113
    %v1115 = vperm.slane %v1111, %v1114
    %v1116 = vrot.slane %v1024, 4
    %v1117 = vsel %vm850, %v1116, %v1008
    %v1119 = vunpack.c.l.s4 1983009808
    %v1120 = vunpack.c.0.s8 %v1119
    %v1121 = vperm.slane %v1117, %v1120
    %v1122 = vrot.slane %v1121, 4
    %v1123 = vsel %vm850, %v1122, %v1115
    %v1124 = vrot.slane %v1115, 4
    %v1125 = vsel %vm850, %v1121, %v1124
    %v1127 = vunpack.c.l.s4 1934713408
    %v1128 = vunpack.c.0.s8 %v1127
    %v1129 = vperm.slane %v1123, %v1128
    %v1131 = vunpack.c.l.s4 1934713408
    %v1132 = vunpack.c.0.s8 %v1131
    %v1133 = vperm.slane %v1125, %v1132
    %v1134 = vrot.slane %v1129, 4
    %v1135 = vsel %vm850, 0, %v1134
    %v1136 = vrot.slane %v1133, 4
    %v1137 = vsel %vm850, 0, %v1136
    %v1140 = vpack.i.b16 %v1073, %v1045
    %v1141 = vshrl.u32 %v1045, 16
    %v1142 = vshrl.u32 %v1073, 16
    %v1143 = vpack.i.b16 %v1142, %v1141
    %v1146 = vpack.i.b16 %v1079, %v1051
    %v1147 = vshrl.u32 %v1051, 16
    %v1148 = vshrl.u32 %v1079, 16
    %v1149 = vpack.i.b16 %v1148, %v1147
    %v1152 = vpack.i.b16 %v1077, %v1049
    %v1153 = vshrl.u32 %v1049, 16
    %v1154 = vshrl.u32 %v1077, 16
    %v1155 = vpack.i.b16 %v1154, %v1153
    %v1158 = vpack.i.b16 %v1081, %v1053
    %v1159 = vshrl.u32 %v1053, 16
    %v1160 = vshrl.u32 %v1081, 16
    %v1161 = vpack.i.b16 %v1160, %v1159
    %v1164 = vpack.i.b16 %v1129, %v1101
    %v1165 = vshrl.u32 %v1101, 16
    %v1166 = vshrl.u32 %v1129, 16
    %v1167 = vpack.i.b16 %v1166, %v1165
    %v1170 = vpack.i.b16 %v1135, %v1107
    %v1171 = vshrl.u32 %v1107, 16
    %v1172 = vshrl.u32 %v1135, 16
    %v1173 = vpack.i.b16 %v1172, %v1171
    %v1176 = vpack.i.b16 %v1133, %v1105
    %v1177 = vshrl.u32 %v1105, 16
    %v1178 = vshrl.u32 %v1133, 16
    %v1179 = vpack.i.b16 %v1178, %v1177
    %v1182 = vpack.i.b16 %v1137, %v1109
    %v1183 = vshrl.u32 %v1109, 16
    %v1184 = vshrl.u32 %v1137, 16
    %v1185 = vpack.i.b16 %v1184, %v1183
    %v1186 = vpack.c.bf16 %v725, %v711
    %v1187 = vpack.c.bf16 %v753, %v739
    %v1188 = vpack.c.bf16 %v727, %v713
    %v1189 = vpack.c.bf16 %v755, %v741
    %v1192 = vrot.slane %v1186, 4
    %v1193 = vrot.slane %v1188, 4
    %1196 = vrot.lane.b32.xlu0 %v1186, 64
    %v1197 = vpop.permute.xlu0 %1196
    %1198 = vrot.lane.b32.xlu0 %v1188, 64
    %v1199 = vpop.permute.xlu0 %1198
    %v1200 = vrot.slane %v1197, 4
    %v1201 = vrot.slane %v1199, 4
    %v1206 = vrot.slane %v1187, 4
    %v1207 = vrot.slane %v1189, 4
    %1210 = vrot.lane.b32.xlu0 %v1187, 64
    %v1211 = vpop.permute.xlu0 %1210
    %1212 = vrot.lane.b32.xlu0 %v1189, 64
    %v1213 = vpop.permute.xlu0 %1212
    %v1214 = vrot.slane %v1211, 4
    %v1215 = vrot.slane %v1213, 4
    %v1222 = vrot.slane %v1187, 4
    %v1223 = vsel %vm850, %v1222, %v1186
    %v1225 = vunpack.c.l.s4 1983009808
    %v1226 = vunpack.c.0.s8 %v1225
    %v1227 = vperm.slane %v1223, %v1226
    %v1228 = vrot.slane %v1206, 4
    %v1229 = vsel %vm850, %v1228, %v1192
    %v1231 = vunpack.c.l.s4 1983009808
    %v1232 = vunpack.c.0.s8 %v1231
    %v1233 = vperm.slane %v1229, %v1232
    %v1234 = vrot.slane %v1233, 4
    %v1235 = vsel %vm850, %v1234, %v1227
    %v1236 = vrot.slane %v1227, 4
    %v1237 = vsel %vm850, %v1233, %v1236
    %v1239 = vunpack.c.l.s4 1934713408
    %v1240 = vunpack.c.0.s8 %v1239
    %v1241 = vperm.slane %v1235, %v1240
    %v1243 = vunpack.c.l.s4 1934713408
    %v1244 = vunpack.c.0.s8 %v1243
    %v1245 = vperm.slane %v1237, %v1244
    %v1246 = vrot.slane %v1241, 4
    %v1247 = vsel %vm850, 0, %v1246
    %v1248 = vrot.slane %v1245, 4
    %v1249 = vsel %vm850, 0, %v1248
    %v1250 = vrot.slane %v1211, 4
    %v1251 = vsel %vm850, %v1250, %v1197
    %v1253 = vunpack.c.l.s4 1983009808
    %v1254 = vunpack.c.0.s8 %v1253
    %v1255 = vperm.slane %v1251, %v1254
    %v1256 = vrot.slane %v1214, 4
    %v1257 = vsel %vm850, %v1256, %v1200
    %v1259 = vunpack.c.l.s4 1983009808
    %v1260 = vunpack.c.0.s8 %v1259
    %v1261 = vperm.slane %v1257, %v1260
    %v1262 = vrot.slane %v1261, 4
    %v1263 = vsel %vm850, %v1262, %v1255
    %v1264 = vrot.slane %v1255, 4
    %v1265 = vsel %vm850, %v1261, %v1264
    %v1267 = vunpack.c.l.s4 1934713408
    %v1268 = vunpack.c.0.s8 %v1267
    %v1269 = vperm.slane %v1263, %v1268
    %v1271 = vunpack.c.l.s4 1934713408
    %v1272 = vunpack.c.0.s8 %v1271
    %v1273 = vperm.slane %v1265, %v1272
    %v1274 = vrot.slane %v1269, 4
    %v1275 = vsel %vm850, 0, %v1274
    %v1276 = vrot.slane %v1273, 4
    %v1277 = vsel %vm850, 0, %v1276
    %v1278 = vrot.slane %v1189, 4
    %v1279 = vsel %vm850, %v1278, %v1188
    %v1281 = vunpack.c.l.s4 1983009808
    %v1282 = vunpack.c.0.s8 %v1281
    %v1283 = vperm.slane %v1279, %v1282
    %v1284 = vrot.slane %v1207, 4
    %v1285 = vsel %vm850, %v1284, %v1193
    %v1287 = vunpack.c.l.s4 1983009808
    %v1288 = vunpack.c.0.s8 %v1287
    %v1289 = vperm.slane %v1285, %v1288
    %v1290 = vrot.slane %v1289, 4
    %v1291 = vsel %vm850, %v1290, %v1283
    %v1292 = vrot.slane %v1283, 4
    %v1293 = vsel %vm850, %v1289, %v1292
    %v1295 = vunpack.c.l.s4 1934713408
    %v1296 = vunpack.c.0.s8 %v1295
    %v1297 = vperm.slane %v1291, %v1296
    %v1299 = vunpack.c.l.s4 1934713408
    %v1300 = vunpack.c.0.s8 %v1299
    %v1301 = vperm.slane %v1293, %v1300
    %v1302 = vrot.slane %v1297, 4
    %v1303 = vsel %vm850, 0, %v1302
    %v1304 = vrot.slane %v1301, 4
    %v1305 = vsel %vm850, 0, %v1304
    %v1306 = vrot.slane %v1213, 4
    %v1307 = vsel %vm850, %v1306, %v1199
    %v1309 = vunpack.c.l.s4 1983009808
    %v1310 = vunpack.c.0.s8 %v1309
    %v1311 = vperm.slane %v1307, %v1310
    %v1312 = vrot.slane %v1215, 4
    %v1313 = vsel %vm850, %v1312, %v1201
    %v1315 = vunpack.c.l.s4 1983009808
    %v1316 = vunpack.c.0.s8 %v1315
    %v1317 = vperm.slane %v1313, %v1316
    %v1318 = vrot.slane %v1317, 4
    %v1319 = vsel %vm850, %v1318, %v1311
    %v1320 = vrot.slane %v1311, 4
    %v1321 = vsel %vm850, %v1317, %v1320
    %v1323 = vunpack.c.l.s4 1934713408
    %v1324 = vunpack.c.0.s8 %v1323
    %v1325 = vperm.slane %v1319, %v1324
    %v1327 = vunpack.c.l.s4 1934713408
    %v1328 = vunpack.c.0.s8 %v1327
    %v1329 = vperm.slane %v1321, %v1328
    %v1330 = vrot.slane %v1325, 4
    %v1331 = vsel %vm850, 0, %v1330
    %v1332 = vrot.slane %v1329, 4
    %v1333 = vsel %vm850, 0, %v1332
    %v1336 = vpack.i.b16 %v1269, %v1241
    %v1338 = vshrl.u32 %v1241, 16
    %v1339 = vshrl.u32 %v1269, 16
    %v1340 = vpack.i.b16 %v1339, %v1338
    %v1344 = vpack.i.b16 %v1275, %v1247
    %v1346 = vshrl.u32 %v1247, 16
    %v1347 = vshrl.u32 %v1275, 16
    %v1348 = vpack.i.b16 %v1347, %v1346
    %v1352 = vpack.i.b16 %v1273, %v1245
    %v1354 = vshrl.u32 %v1245, 16
    %v1355 = vshrl.u32 %v1273, 16
    %v1356 = vpack.i.b16 %v1355, %v1354
    %v1360 = vpack.i.b16 %v1277, %v1249
    %v1362 = vshrl.u32 %v1249, 16
    %v1363 = vshrl.u32 %v1277, 16
    %v1364 = vpack.i.b16 %v1363, %v1362
    %v1368 = vpack.i.b16 %v1325, %v1297
    %v1370 = vshrl.u32 %v1297, 16
    %v1371 = vshrl.u32 %v1325, 16
    %v1372 = vpack.i.b16 %v1371, %v1370
    %v1376 = vpack.i.b16 %v1331, %v1303
    %v1378 = vshrl.u32 %v1303, 16
    %v1379 = vshrl.u32 %v1331, 16
    %v1380 = vpack.i.b16 %v1379, %v1378
    %v1384 = vpack.i.b16 %v1329, %v1301
    %v1386 = vshrl.u32 %v1301, 16
    %v1387 = vshrl.u32 %v1329, 16
    %v1388 = vpack.i.b16 %v1387, %v1386
    %v1392 = vpack.i.b16 %v1333, %v1305
    %v1394 = vshrl.u32 %v1305, 16
    %v1395 = vshrl.u32 %v1333, 16
    %v1396 = vpack.i.b16 %v1395, %v1394
    %v1398 = vrot.slane %v1352, 4
    %v1399 = vsel %vm850, %v1398, %v1336
    %v1401 = vunpack.c.l.s4 1983009808
    %v1402 = vunpack.c.0.s8 %v1401
    %v1403 = vperm.slane %v1399, %v1402
    %v1404 = vrot.slane %v1360, 4
    %v1405 = vsel %vm850, %v1404, %v1344
    %v1407 = vunpack.c.l.s4 1983009808
    %v1408 = vunpack.c.0.s8 %v1407
    %v1409 = vperm.slane %v1405, %v1408
    %v1410 = vrot.slane %v1409, 4
    %v1411 = vsel %vm850, %v1410, %v1403
    %v1412 = vrot.slane %v1403, 4
    %v1413 = vsel %vm850, %v1409, %v1412
    %v1415 = vunpack.c.l.s4 1934713408
    %v1416 = vunpack.c.0.s8 %v1415
    %v1417 = vperm.slane %v1411, %v1416
    %v1419 = vunpack.c.l.s4 1934713408
    %v1420 = vunpack.c.0.s8 %v1419
    %v1421 = vperm.slane %v1413, %v1420
    %v1422 = vrot.slane %v1417, 4
    %v1423 = vsel %vm850, 0, %v1422
    %v1424 = vrot.slane %v1421, 4
    %v1425 = vsel %vm850, 0, %v1424
    %v1426 = vrot.slane %v1356, 4
    %v1427 = vsel %vm850, %v1426, %v1340
    %v1429 = vunpack.c.l.s4 1983009808
    %v1430 = vunpack.c.0.s8 %v1429
    %v1431 = vperm.slane %v1427, %v1430
    %v1432 = vrot.slane %v1364, 4
    %v1433 = vsel %vm850, %v1432, %v1348
    %v1435 = vunpack.c.l.s4 1983009808
    %v1436 = vunpack.c.0.s8 %v1435
    %v1437 = vperm.slane %v1433, %v1436
    %v1438 = vrot.slane %v1437, 4
    %v1439 = vsel %vm850, %v1438, %v1431
    %v1440 = vrot.slane %v1431, 4
    %v1441 = vsel %vm850, %v1437, %v1440
    %v1443 = vunpack.c.l.s4 1934713408
    %v1444 = vunpack.c.0.s8 %v1443
    %v1445 = vperm.slane %v1439, %v1444
    %v1447 = vunpack.c.l.s4 1934713408
    %v1448 = vunpack.c.0.s8 %v1447
    %v1449 = vperm.slane %v1441, %v1448
    %v1450 = vrot.slane %v1445, 4
    %v1451 = vsel %vm850, 0, %v1450
    %v1452 = vrot.slane %v1449, 4
    %v1453 = vsel %vm850, 0, %v1452
    %v1454 = vrot.slane %v1384, 4
    %v1455 = vsel %vm850, %v1454, %v1368
    %v1457 = vunpack.c.l.s4 1983009808
    %v1458 = vunpack.c.0.s8 %v1457
    %v1459 = vperm.slane %v1455, %v1458
    %v1460 = vrot.slane %v1392, 4
    %v1461 = vsel %vm850, %v1460, %v1376
    %v1463 = vunpack.c.l.s4 1983009808
    %v1464 = vunpack.c.0.s8 %v1463
    %v1465 = vperm.slane %v1461, %v1464
    %v1466 = vrot.slane %v1465, 4
    %v1467 = vsel %vm850, %v1466, %v1459
    %v1468 = vrot.slane %v1459, 4
    %v1469 = vsel %vm850, %v1465, %v1468
    %v1471 = vunpack.c.l.s4 1934713408
    %v1472 = vunpack.c.0.s8 %v1471
    %v1473 = vperm.slane %v1467, %v1472
    %v1475 = vunpack.c.l.s4 1934713408
    %v1476 = vunpack.c.0.s8 %v1475
    %v1477 = vperm.slane %v1469, %v1476
    %v1478 = vrot.slane %v1473, 4
    %v1479 = vsel %vm850, 0, %v1478
    %v1480 = vrot.slane %v1477, 4
    %v1481 = vsel %vm850, 0, %v1480
    %v1482 = vrot.slane %v1388, 4
    %v1483 = vsel %vm850, %v1482, %v1372
    %v1485 = vunpack.c.l.s4 1983009808
    %v1486 = vunpack.c.0.s8 %v1485
    %v1487 = vperm.slane %v1483, %v1486
    %v1488 = vrot.slane %v1396, 4
    %v1489 = vsel %vm850, %v1488, %v1380
    %v1491 = vunpack.c.l.s4 1983009808
    %v1492 = vunpack.c.0.s8 %v1491
    %v1493 = vperm.slane %v1489, %v1492
    %v1494 = vrot.slane %v1493, 4
    %v1495 = vsel %vm850, %v1494, %v1487
    %v1496 = vrot.slane %v1487, 4
    %v1497 = vsel %vm850, %v1493, %v1496
    %v1499 = vunpack.c.l.s4 1934713408
    %v1500 = vunpack.c.0.s8 %v1499
    %v1501 = vperm.slane %v1495, %v1500
    %v1503 = vunpack.c.l.s4 1934713408
    %v1504 = vunpack.c.0.s8 %v1503
    %v1505 = vperm.slane %v1497, %v1504
    %v1506 = vrot.slane %v1501, 4
    %v1507 = vsel %vm850, 0, %v1506
    %v1508 = vrot.slane %v1505, 4
    %v1509 = vsel %vm850, 0, %v1508
    %v1512 = vpack.i.b16 %v1445, %v1417
    %v1513 = vshrl.u32 %v1417, 16
    %v1514 = vshrl.u32 %v1445, 16
    %v1515 = vpack.i.b16 %v1514, %v1513
    %v1518 = vpack.i.b16 %v1451, %v1423
    %v1519 = vshrl.u32 %v1423, 16
    %v1520 = vshrl.u32 %v1451, 16
    %v1521 = vpack.i.b16 %v1520, %v1519
    %v1524 = vpack.i.b16 %v1449, %v1421
    %v1525 = vshrl.u32 %v1421, 16
    %v1526 = vshrl.u32 %v1449, 16
    %v1527 = vpack.i.b16 %v1526, %v1525
    %v1530 = vpack.i.b16 %v1453, %v1425
    %v1531 = vshrl.u32 %v1425, 16
    %v1532 = vshrl.u32 %v1453, 16
    %v1533 = vpack.i.b16 %v1532, %v1531
    %v1536 = vpack.i.b16 %v1501, %v1473
    %v1537 = vshrl.u32 %v1473, 16
    %v1538 = vshrl.u32 %v1501, 16
    %v1539 = vpack.i.b16 %v1538, %v1537
    %v1542 = vpack.i.b16 %v1507, %v1479
    %v1543 = vshrl.u32 %v1479, 16
    %v1544 = vshrl.u32 %v1507, 16
    %v1545 = vpack.i.b16 %v1544, %v1543
    %v1548 = vpack.i.b16 %v1505, %v1477
    %v1549 = vshrl.u32 %v1477, 16
    %v1550 = vshrl.u32 %v1505, 16
    %v1551 = vpack.i.b16 %v1550, %v1549
    %v1554 = vpack.i.b16 %v1509, %v1481
    %v1555 = vshrl.u32 %v1481, 16
    %v1556 = vshrl.u32 %v1509, 16
    %v1557 = vpack.i.b16 %v1556, %v1555
    %v1558 = vpack.c.bf16 %v781, %v767
    %v1559 = vpack.c.bf16 %v809, %v795
    %v1560 = vpack.c.bf16 %v783, %v769
    %v1561 = vpack.c.bf16 %v811, %v797
    %v1564 = vrot.slane %v1558, 4
    %v1565 = vrot.slane %v1560, 4
    %1568 = vrot.lane.b32.xlu0 %v1558, 64
    %v1569 = vpop.permute.xlu0 %1568
    %1570 = vrot.lane.b32.xlu0 %v1560, 64
    %v1571 = vpop.permute.xlu0 %1570
    %v1572 = vrot.slane %v1569, 4
    %v1573 = vrot.slane %v1571, 4
    %v1578 = vrot.slane %v1559, 4
    %v1579 = vrot.slane %v1561, 4
    %1582 = vrot.lane.b32.xlu0 %v1559, 64
    %v1583 = vpop.permute.xlu0 %1582
    %1584 = vrot.lane.b32.xlu0 %v1561, 64
    %v1585 = vpop.permute.xlu0 %1584
    %v1586 = vrot.slane %v1583, 4
    %v1587 = vrot.slane %v1585, 4
    %v1594 = vrot.slane %v1559, 4
    %v1595 = vsel %vm850, %v1594, %v1558
    %v1597 = vunpack.c.l.s4 1983009808
    %v1598 = vunpack.c.0.s8 %v1597
    %v1599 = vperm.slane %v1595, %v1598
    %v1600 = vrot.slane %v1578, 4
    %v1601 = vsel %vm850, %v1600, %v1564
    %v1603 = vunpack.c.l.s4 1983009808
    %v1604 = vunpack.c.0.s8 %v1603
    %v1605 = vperm.slane %v1601, %v1604
    %v1606 = vrot.slane %v1605, 4
    %v1607 = vsel %vm850, %v1606, %v1599
    %v1608 = vrot.slane %v1599, 4
    %v1609 = vsel %vm850, %v1605, %v1608
    %v1611 = vunpack.c.l.s4 1934713408
    %v1612 = vunpack.c.0.s8 %v1611
    %v1613 = vperm.slane %v1607, %v1612
    %v1615 = vunpack.c.l.s4 1934713408
    %v1616 = vunpack.c.0.s8 %v1615
    %v1617 = vperm.slane %v1609, %v1616
    %v1618 = vrot.slane %v1613, 4
    %v1619 = vsel %vm850, 0, %v1618
    %v1620 = vrot.slane %v1617, 4
    %v1621 = vsel %vm850, 0, %v1620
    %v1622 = vrot.slane %v1583, 4
    %v1623 = vsel %vm850, %v1622, %v1569
    %v1625 = vunpack.c.l.s4 1983009808
    %v1626 = vunpack.c.0.s8 %v1625
    %v1627 = vperm.slane %v1623, %v1626
    %v1628 = vrot.slane %v1586, 4
    %v1629 = vsel %vm850, %v1628, %v1572
    %v1631 = vunpack.c.l.s4 1983009808
    %v1632 = vunpack.c.0.s8 %v1631
    %v1633 = vperm.slane %v1629, %v1632
    %v1634 = vrot.slane %v1633, 4
    %v1635 = vsel %vm850, %v1634, %v1627
    %v1636 = vrot.slane %v1627, 4
    %v1637 = vsel %vm850, %v1633, %v1636
    %v1639 = vunpack.c.l.s4 1934713408
    %v1640 = vunpack.c.0.s8 %v1639
    %v1641 = vperm.slane %v1635, %v1640
    %v1643 = vunpack.c.l.s4 1934713408
    %v1644 = vunpack.c.0.s8 %v1643
    %v1645 = vperm.slane %v1637, %v1644
    %v1646 = vrot.slane %v1641, 4
    %v1647 = vsel %vm850, 0, %v1646
    %v1648 = vrot.slane %v1645, 4
    %v1649 = vsel %vm850, 0, %v1648
    %v1650 = vrot.slane %v1561, 4
    %v1651 = vsel %vm850, %v1650, %v1560
    %v1653 = vunpack.c.l.s4 1983009808
    %v1654 = vunpack.c.0.s8 %v1653
    %v1655 = vperm.slane %v1651, %v1654
    %v1656 = vrot.slane %v1579, 4
    %v1657 = vsel %vm850, %v1656, %v1565
    %v1659 = vunpack.c.l.s4 1983009808
    %v1660 = vunpack.c.0.s8 %v1659
    %v1661 = vperm.slane %v1657, %v1660
    %v1662 = vrot.slane %v1661, 4
    %v1663 = vsel %vm850, %v1662, %v1655
    %v1664 = vrot.slane %v1655, 4
    %v1665 = vsel %vm850, %v1661, %v1664
    %v1667 = vunpack.c.l.s4 1934713408
    %v1668 = vunpack.c.0.s8 %v1667
    %v1669 = vperm.slane %v1663, %v1668
    %v1671 = vunpack.c.l.s4 1934713408
    %v1672 = vunpack.c.0.s8 %v1671
    %v1673 = vperm.slane %v1665, %v1672
    %v1674 = vrot.slane %v1669, 4
    %v1675 = vsel %vm850, 0, %v1674
    %v1676 = vrot.slane %v1673, 4
    %v1677 = vsel %vm850, 0, %v1676
    %v1678 = vrot.slane %v1585, 4
    %v1679 = vsel %vm850, %v1678, %v1571
    %v1681 = vunpack.c.l.s4 1983009808
    %v1682 = vunpack.c.0.s8 %v1681
    %v1683 = vperm.slane %v1679, %v1682
    %v1684 = vrot.slane %v1587, 4
    %v1685 = vsel %vm850, %v1684, %v1573
    %v1687 = vunpack.c.l.s4 1983009808
    %v1688 = vunpack.c.0.s8 %v1687
    %v1689 = vperm.slane %v1685, %v1688
    %v1690 = vrot.slane %v1689, 4
    %v1691 = vsel %vm850, %v1690, %v1683
    %v1692 = vrot.slane %v1683, 4
    %v1693 = vsel %vm850, %v1689, %v1692
    %v1695 = vunpack.c.l.s4 1934713408
    %v1696 = vunpack.c.0.s8 %v1695
    %v1697 = vperm.slane %v1691, %v1696
    %v1699 = vunpack.c.l.s4 1934713408
    %v1700 = vunpack.c.0.s8 %v1699
    %v1701 = vperm.slane %v1693, %v1700
    %v1702 = vrot.slane %v1697, 4
    %v1703 = vsel %vm850, 0, %v1702
    %v1704 = vrot.slane %v1701, 4
    %v1705 = vsel %vm850, 0, %v1704
    %v1708 = vpack.i.b16 %v1641, %v1613
    %v1710 = vshrl.u32 %v1613, 16
    %v1711 = vshrl.u32 %v1641, 16
    %v1712 = vpack.i.b16 %v1711, %v1710
    %v1716 = vpack.i.b16 %v1647, %v1619
    %v1718 = vshrl.u32 %v1619, 16
    %v1719 = vshrl.u32 %v1647, 16
    %v1720 = vpack.i.b16 %v1719, %v1718
    %v1724 = vpack.i.b16 %v1645, %v1617
    %v1726 = vshrl.u32 %v1617, 16
    %v1727 = vshrl.u32 %v1645, 16
    %v1728 = vpack.i.b16 %v1727, %v1726
    %v1732 = vpack.i.b16 %v1649, %v1621
    %v1734 = vshrl.u32 %v1621, 16
    %v1735 = vshrl.u32 %v1649, 16
    %v1736 = vpack.i.b16 %v1735, %v1734
    %v1740 = vpack.i.b16 %v1697, %v1669
    %v1742 = vshrl.u32 %v1669, 16
    %v1743 = vshrl.u32 %v1697, 16
    %v1744 = vpack.i.b16 %v1743, %v1742
    %v1748 = vpack.i.b16 %v1703, %v1675
    %v1750 = vshrl.u32 %v1675, 16
    %v1751 = vshrl.u32 %v1703, 16
    %v1752 = vpack.i.b16 %v1751, %v1750
    %v1756 = vpack.i.b16 %v1701, %v1673
    %v1758 = vshrl.u32 %v1673, 16
    %v1759 = vshrl.u32 %v1701, 16
    %v1760 = vpack.i.b16 %v1759, %v1758
    %v1764 = vpack.i.b16 %v1705, %v1677
    %v1766 = vshrl.u32 %v1677, 16
    %v1767 = vshrl.u32 %v1705, 16
    %v1768 = vpack.i.b16 %v1767, %v1766
    %v1770 = vrot.slane %v1724, 4
    %v1771 = vsel %vm850, %v1770, %v1708
    %v1773 = vunpack.c.l.s4 1983009808
    %v1774 = vunpack.c.0.s8 %v1773
    %v1775 = vperm.slane %v1771, %v1774
    %v1776 = vrot.slane %v1732, 4
    %v1777 = vsel %vm850, %v1776, %v1716
    %v1779 = vunpack.c.l.s4 1983009808
    %v1780 = vunpack.c.0.s8 %v1779
    %v1781 = vperm.slane %v1777, %v1780
    %v1782 = vrot.slane %v1781, 4
    %v1783 = vsel %vm850, %v1782, %v1775
    %v1784 = vrot.slane %v1775, 4
    %v1785 = vsel %vm850, %v1781, %v1784
    %v1787 = vunpack.c.l.s4 1934713408
    %v1788 = vunpack.c.0.s8 %v1787
    %v1789 = vperm.slane %v1783, %v1788
    %v1791 = vunpack.c.l.s4 1934713408
    %v1792 = vunpack.c.0.s8 %v1791
    %v1793 = vperm.slane %v1785, %v1792
    %v1794 = vrot.slane %v1789, 4
    %v1795 = vsel %vm850, 0, %v1794
    %v1796 = vrot.slane %v1793, 4
    %v1797 = vsel %vm850, 0, %v1796
    %v1798 = vrot.slane %v1728, 4
    %v1799 = vsel %vm850, %v1798, %v1712
    %v1801 = vunpack.c.l.s4 1983009808
    %v1802 = vunpack.c.0.s8 %v1801
    %v1803 = vperm.slane %v1799, %v1802
    %v1804 = vrot.slane %v1736, 4
    %v1805 = vsel %vm850, %v1804, %v1720
    %v1807 = vunpack.c.l.s4 1983009808
    %v1808 = vunpack.c.0.s8 %v1807
    %v1809 = vperm.slane %v1805, %v1808
    %v1810 = vrot.slane %v1809, 4
    %v1811 = vsel %vm850, %v1810, %v1803
    %v1812 = vrot.slane %v1803, 4
    %v1813 = vsel %vm850, %v1809, %v1812
    %v1815 = vunpack.c.l.s4 1934713408
    %v1816 = vunpack.c.0.s8 %v1815
    %v1817 = vperm.slane %v1811, %v1816
    %v1819 = vunpack.c.l.s4 1934713408
    %v1820 = vunpack.c.0.s8 %v1819
    %v1821 = vperm.slane %v1813, %v1820
    %v1822 = vrot.slane %v1817, 4
    %v1823 = vsel %vm850, 0, %v1822
    %v1824 = vrot.slane %v1821, 4
    %v1825 = vsel %vm850, 0, %v1824
    %v1826 = vrot.slane %v1756, 4
    %v1827 = vsel %vm850, %v1826, %v1740
    %v1829 = vunpack.c.l.s4 1983009808
    %v1830 = vunpack.c.0.s8 %v1829
    %v1831 = vperm.slane %v1827, %v1830
    %v1832 = vrot.slane %v1764, 4
    %v1833 = vsel %vm850, %v1832, %v1748
    %v1835 = vunpack.c.l.s4 1983009808
    %v1836 = vunpack.c.0.s8 %v1835
    %v1837 = vperm.slane %v1833, %v1836
    %v1838 = vrot.slane %v1837, 4
    %v1839 = vsel %vm850, %v1838, %v1831
    %v1840 = vrot.slane %v1831, 4
    %v1841 = vsel %vm850, %v1837, %v1840
    %v1843 = vunpack.c.l.s4 1934713408
    %v1844 = vunpack.c.0.s8 %v1843
    %v1845 = vperm.slane %v1839, %v1844
    %v1847 = vunpack.c.l.s4 1934713408
    %v1848 = vunpack.c.0.s8 %v1847
    %v1849 = vperm.slane %v1841, %v1848
    %v1850 = vrot.slane %v1845, 4
    %v1851 = vsel %vm850, 0, %v1850
    %v1852 = vrot.slane %v1849, 4
    %v1853 = vsel %vm850, 0, %v1852
    %v1854 = vrot.slane %v1760, 4
    %v1855 = vsel %vm850, %v1854, %v1744
    %v1857 = vunpack.c.l.s4 1983009808
    %v1858 = vunpack.c.0.s8 %v1857
    %v1859 = vperm.slane %v1855, %v1858
    %v1860 = vrot.slane %v1768, 4
    %v1861 = vsel %vm850, %v1860, %v1752
    %v1863 = vunpack.c.l.s4 1983009808
    %v1864 = vunpack.c.0.s8 %v1863
    %v1865 = vperm.slane %v1861, %v1864
    %v1866 = vrot.slane %v1865, 4
    %v1867 = vsel %vm850, %v1866, %v1859
    %v1868 = vrot.slane %v1859, 4
    %v1869 = vsel %vm850, %v1865, %v1868
    %v1871 = vunpack.c.l.s4 1934713408
    %v1872 = vunpack.c.0.s8 %v1871
    %v1873 = vperm.slane %v1867, %v1872
    %v1875 = vunpack.c.l.s4 1934713408
    %v1876 = vunpack.c.0.s8 %v1875
    %v1877 = vperm.slane %v1869, %v1876
    %v1878 = vrot.slane %v1873, 4
    %v1879 = vsel %vm850, 0, %v1878
    %v1880 = vrot.slane %v1877, 4
    %v1881 = vsel %vm850, 0, %v1880
    %v1884 = vpack.i.b16 %v1817, %v1789
    %v1885 = vshrl.u32 %v1789, 16
    %v1886 = vshrl.u32 %v1817, 16
    %v1887 = vpack.i.b16 %v1886, %v1885
    %v1890 = vpack.i.b16 %v1823, %v1795
    %v1891 = vshrl.u32 %v1795, 16
    %v1892 = vshrl.u32 %v1823, 16
    %v1893 = vpack.i.b16 %v1892, %v1891
    %v1896 = vpack.i.b16 %v1821, %v1793
    %v1897 = vshrl.u32 %v1793, 16
    %v1898 = vshrl.u32 %v1821, 16
    %v1899 = vpack.i.b16 %v1898, %v1897
    %v1902 = vpack.i.b16 %v1825, %v1797
    %v1903 = vshrl.u32 %v1797, 16
    %v1904 = vshrl.u32 %v1825, 16
    %v1905 = vpack.i.b16 %v1904, %v1903
    %v1908 = vpack.i.b16 %v1873, %v1845
    %v1909 = vshrl.u32 %v1845, 16
    %v1910 = vshrl.u32 %v1873, 16
    %v1911 = vpack.i.b16 %v1910, %v1909
    %v1914 = vpack.i.b16 %v1879, %v1851
    %v1915 = vshrl.u32 %v1851, 16
    %v1916 = vshrl.u32 %v1879, 16
    %v1917 = vpack.i.b16 %v1916, %v1915
    %v1920 = vpack.i.b16 %v1877, %v1849
    %v1921 = vshrl.u32 %v1849, 16
    %v1922 = vshrl.u32 %v1877, 16
    %v1923 = vpack.i.b16 %v1922, %v1921
    %v1926 = vpack.i.b16 %v1881, %v1853
    %v1927 = vshrl.u32 %v1853, 16
    %v1928 = vshrl.u32 %v1881, 16
    %v1929 = vpack.i.b16 %v1928, %v1927
    %vm1930 = vcmask 523264
    %v1932 = vsel %vm1930, %v1140, 0
    %v1935 = vsel %vm1930, %v1512, 0
    %1937 = vmatpush.bf16.xpose.msra.mxu0 0
    %1938 = vmatpush.bf16.xpose.msra.mxu0 0
    %1939 = vmatpush.bf16.xpose.msra.mxu0 0
    %1940 = vmatpush.bf16.xpose.msra.mxu0 0
    %1941 = vmatpush.bf16.xpose.msra.mxu0 0
    %1942 = vmatpush.bf16.xpose.msra.mxu0 0
    %1943 = vmatpush.bf16.xpose.msra.mxu0 0
    %1944 = vmatpush.bf16.xpose.msra.mxu0 %v1935
    %1945 = vmatmul.bf16.gmra.mxu0 %v1932
    %v1946 = vpop.f32.mrf.mxu0
    %v1947 = vadd.f32 0.0, %v1946
    %v1948 = vpop.f32.mrf.mxu0
    %1949 = vdwg.mxu0
    %v1951 = vsel %vm1930, %v1164, 0
    %v1954 = vsel %vm1930, %v1536, 0
    %1956 = vmatpush.bf16.xpose.msra.mxu0 0
    %1957 = vmatpush.bf16.xpose.msra.mxu0 0
    %1958 = vmatpush.bf16.xpose.msra.mxu0 0
    %1959 = vmatpush.bf16.xpose.msra.mxu0 0
    %1960 = vmatpush.bf16.xpose.msra.mxu0 0
    %1961 = vmatpush.bf16.xpose.msra.mxu0 0
    %1962 = vmatpush.bf16.xpose.msra.mxu0 0
    %1963 = vmatpush.bf16.xpose.msra.mxu0 %v1954
    %1964 = vmatmul.bf16.gmra.mxu0 %v1951
    %v1965 = vpop.f32.mrf.mxu0
    %v1966 = vadd.f32 0.0, %v1965
    %v1967 = vpop.f32.mrf.mxu0
    %1968 = vdwg.mxu0
    %v1970 = vsel %vm1930, %v1143, 0
    %v1973 = vsel %vm1930, %v1515, 0
    %1975 = vmatpush.bf16.xpose.msra.mxu0 0
    %1976 = vmatpush.bf16.xpose.msra.mxu0 0
    %1977 = vmatpush.bf16.xpose.msra.mxu0 0
    %1978 = vmatpush.bf16.xpose.msra.mxu0 0
    %1979 = vmatpush.bf16.xpose.msra.mxu0 0
    %1980 = vmatpush.bf16.xpose.msra.mxu0 0
    %1981 = vmatpush.bf16.xpose.msra.mxu0 0
    %1982 = vmatpush.bf16.xpose.msra.mxu0 %v1973
    %1983 = vmatmul.bf16.gmra.mxu0 %v1970
    %v1984 = vpop.f32.mrf.mxu0
    %v1985 = vadd.f32 0.0, %v1984
    %v1986 = vpop.f32.mrf.mxu0
    %1987 = vdwg.mxu0
    %v1989 = vsel %vm1930, %v1167, 0
    %v1992 = vsel %vm1930, %v1539, 0
    %1994 = vmatpush.bf16.xpose.msra.mxu0 0
    %1995 = vmatpush.bf16.xpose.msra.mxu0 0
    %1996 = vmatpush.bf16.xpose.msra.mxu0 0
    %1997 = vmatpush.bf16.xpose.msra.mxu0 0
    %1998 = vmatpush.bf16.xpose.msra.mxu0 0
    %1999 = vmatpush.bf16.xpose.msra.mxu0 0
    %2000 = vmatpush.bf16.xpose.msra.mxu0 0
    %2001 = vmatpush.bf16.xpose.msra.mxu0 %v1992
    %2002 = vmatmul.bf16.gmra.mxu0 %v1989
    %v2003 = vpop.f32.mrf.mxu0
    %v2004 = vadd.f32 0.0, %v2003
    %v2005 = vpop.f32.mrf.mxu0
    %2006 = vdwg.mxu0
    %v2008 = vsel %vm1930, %v1146, 0
    %v2011 = vsel %vm1930, %v1518, 0
    %2013 = vmatpush.bf16.xpose.msra.mxu0 0
    %2014 = vmatpush.bf16.xpose.msra.mxu0 0
    %2015 = vmatpush.bf16.xpose.msra.mxu0 0
    %2016 = vmatpush.bf16.xpose.msra.mxu0 0
    %2017 = vmatpush.bf16.xpose.msra.mxu0 0
    %2018 = vmatpush.bf16.xpose.msra.mxu0 0
    %2019 = vmatpush.bf16.xpose.msra.mxu0 0
    %2020 = vmatpush.bf16.xpose.msra.mxu0 %v2011
    %2021 = vmatmul.bf16.gmra.mxu0 %v2008
    %v2022 = vpop.f32.mrf.mxu0
    %v2023 = vadd.f32 0.0, %v2022
    %v2024 = vpop.f32.mrf.mxu0
    %2025 = vdwg.mxu0
    %v2027 = vsel %vm1930, %v1170, 0
    %v2030 = vsel %vm1930, %v1542, 0
    %2032 = vmatpush.bf16.xpose.msra.mxu0 0
    %2033 = vmatpush.bf16.xpose.msra.mxu0 0
    %2034 = vmatpush.bf16.xpose.msra.mxu0 0
    %2035 = vmatpush.bf16.xpose.msra.mxu0 0
    %2036 = vmatpush.bf16.xpose.msra.mxu0 0
    %2037 = vmatpush.bf16.xpose.msra.mxu0 0
    %2038 = vmatpush.bf16.xpose.msra.mxu0 0
    %2039 = vmatpush.bf16.xpose.msra.mxu0 %v2030
    %2040 = vmatmul.bf16.gmra.mxu0 %v2027
    %v2041 = vpop.f32.mrf.mxu0
    %v2042 = vadd.f32 0.0, %v2041
    %v2043 = vpop.f32.mrf.mxu0
    %2044 = vdwg.mxu0
    %v2046 = vsel %vm1930, %v1149, 0
    %v2049 = vsel %vm1930, %v1521, 0
    %2051 = vmatpush.bf16.xpose.msra.mxu0 0
    %2052 = vmatpush.bf16.xpose.msra.mxu0 0
    %2053 = vmatpush.bf16.xpose.msra.mxu0 0
    %2054 = vmatpush.bf16.xpose.msra.mxu0 0
    %2055 = vmatpush.bf16.xpose.msra.mxu0 0
    %2056 = vmatpush.bf16.xpose.msra.mxu0 0
    %2057 = vmatpush.bf16.xpose.msra.mxu0 0
    %2058 = vmatpush.bf16.xpose.msra.mxu0 %v2049
    %2059 = vmatmul.bf16.gmra.mxu0 %v2046
    %v2060 = vpop.f32.mrf.mxu0
    %v2061 = vadd.f32 0.0, %v2060
    %v2062 = vpop.f32.mrf.mxu0
    %2063 = vdwg.mxu0
    %v2065 = vsel %vm1930, %v1173, 0
    %v2068 = vsel %vm1930, %v1545, 0
    %2070 = vmatpush.bf16.xpose.msra.mxu0 0
    %2071 = vmatpush.bf16.xpose.msra.mxu0 0
    %2072 = vmatpush.bf16.xpose.msra.mxu0 0
    %2073 = vmatpush.bf16.xpose.msra.mxu0 0
    %2074 = vmatpush.bf16.xpose.msra.mxu0 0
    %2075 = vmatpush.bf16.xpose.msra.mxu0 0
    %2076 = vmatpush.bf16.xpose.msra.mxu0 0
    %2077 = vmatpush.bf16.xpose.msra.mxu0 %v2068
    %2078 = vmatmul.bf16.gmra.mxu0 %v2065
    %v2079 = vpop.f32.mrf.mxu0
    %v2080 = vadd.f32 0.0, %v2079
    %v2081 = vpop.f32.mrf.mxu0
    %2082 = vdwg.mxu0
    %v2084 = vsel %vm1930, %v1152, 0
    %v2087 = vsel %vm1930, %v1524, 0
    %2089 = vmatpush.bf16.xpose.msra.mxu0 0
    %2090 = vmatpush.bf16.xpose.msra.mxu0 0
    %2091 = vmatpush.bf16.xpose.msra.mxu0 0
    %2092 = vmatpush.bf16.xpose.msra.mxu0 0
    %2093 = vmatpush.bf16.xpose.msra.mxu0 0
    %2094 = vmatpush.bf16.xpose.msra.mxu0 0
    %2095 = vmatpush.bf16.xpose.msra.mxu0 0
    %2096 = vmatpush.bf16.xpose.msra.mxu0 %v2087
    %2097 = vmatmul.bf16.gmra.mxu0 %v2084
    %v2098 = vpop.f32.mrf.mxu0
    %v2099 = vadd.f32 0.0, %v2098
    %v2100 = vpop.f32.mrf.mxu0
    %2101 = vdwg.mxu0
    %v2103 = vsel %vm1930, %v1176, 0
    %v2106 = vsel %vm1930, %v1548, 0
    %2108 = vmatpush.bf16.xpose.msra.mxu0 0
    %2109 = vmatpush.bf16.xpose.msra.mxu0 0
    %2110 = vmatpush.bf16.xpose.msra.mxu0 0
    %2111 = vmatpush.bf16.xpose.msra.mxu0 0
    %2112 = vmatpush.bf16.xpose.msra.mxu0 0
    %2113 = vmatpush.bf16.xpose.msra.mxu0 0
    %2114 = vmatpush.bf16.xpose.msra.mxu0 0
    %2115 = vmatpush.bf16.xpose.msra.mxu0 %v2106
    %2116 = vmatmul.bf16.gmra.mxu0 %v2103
    %v2117 = vpop.f32.mrf.mxu0
    %v2118 = vadd.f32 0.0, %v2117
    %v2119 = vpop.f32.mrf.mxu0
    %2120 = vdwg.mxu0
    %v2122 = vsel %vm1930, %v1155, 0
    %v2125 = vsel %vm1930, %v1527, 0
    %2127 = vmatpush.bf16.xpose.msra.mxu0 0
    %2128 = vmatpush.bf16.xpose.msra.mxu0 0
    %2129 = vmatpush.bf16.xpose.msra.mxu0 0
    %2130 = vmatpush.bf16.xpose.msra.mxu0 0
    %2131 = vmatpush.bf16.xpose.msra.mxu0 0
    %2132 = vmatpush.bf16.xpose.msra.mxu0 0
    %2133 = vmatpush.bf16.xpose.msra.mxu0 0
    %2134 = vmatpush.bf16.xpose.msra.mxu0 %v2125
    %2135 = vmatmul.bf16.gmra.mxu0 %v2122
    %v2136 = vpop.f32.mrf.mxu0
    %v2137 = vadd.f32 0.0, %v2136
    %v2138 = vpop.f32.mrf.mxu0
    %2139 = vdwg.mxu0
    %v2141 = vsel %vm1930, %v1179, 0
    %v2144 = vsel %vm1930, %v1551, 0
    %2146 = vmatpush.bf16.xpose.msra.mxu0 0
    %2147 = vmatpush.bf16.xpose.msra.mxu0 0
    %2148 = vmatpush.bf16.xpose.msra.mxu0 0
    %2149 = vmatpush.bf16.xpose.msra.mxu0 0
    %2150 = vmatpush.bf16.xpose.msra.mxu0 0
    %2151 = vmatpush.bf16.xpose.msra.mxu0 0
    %2152 = vmatpush.bf16.xpose.msra.mxu0 0
    %2153 = vmatpush.bf16.xpose.msra.mxu0 %v2144
    %2154 = vmatmul.bf16.gmra.mxu0 %v2141
    %v2155 = vpop.f32.mrf.mxu0
    %v2156 = vadd.f32 0.0, %v2155
    %v2157 = vpop.f32.mrf.mxu0
    %2158 = vdwg.mxu0
    %v2160 = vsel %vm1930, %v1158, 0
    %v2163 = vsel %vm1930, %v1530, 0
    %2165 = vmatpush.bf16.xpose.msra.mxu0 0
    %2166 = vmatpush.bf16.xpose.msra.mxu0 0
    %2167 = vmatpush.bf16.xpose.msra.mxu0 0
    %2168 = vmatpush.bf16.xpose.msra.mxu0 0
    %2169 = vmatpush.bf16.xpose.msra.mxu0 0
    %2170 = vmatpush.bf16.xpose.msra.mxu0 0
    %2171 = vmatpush.bf16.xpose.msra.mxu0 0
    %2172 = vmatpush.bf16.xpose.msra.mxu0 %v2163
    %2173 = vmatmul.bf16.gmra.mxu0 %v2160
    %v2174 = vpop.f32.mrf.mxu0
    %v2175 = vadd.f32 0.0, %v2174
    %v2176 = vpop.f32.mrf.mxu0
    %2177 = vdwg.mxu0
    %v2179 = vsel %vm1930, %v1182, 0
    %v2182 = vsel %vm1930, %v1554, 0
    %2184 = vmatpush.bf16.xpose.msra.mxu0 0
    %2185 = vmatpush.bf16.xpose.msra.mxu0 0
    %2186 = vmatpush.bf16.xpose.msra.mxu0 0
    %2187 = vmatpush.bf16.xpose.msra.mxu0 0
    %2188 = vmatpush.bf16.xpose.msra.mxu0 0
    %2189 = vmatpush.bf16.xpose.msra.mxu0 0
    %2190 = vmatpush.bf16.xpose.msra.mxu0 0
    %2191 = vmatpush.bf16.xpose.msra.mxu0 %v2182
    %2192 = vmatmul.bf16.gmra.mxu0 %v2179
    %v2193 = vpop.f32.mrf.mxu0
    %v2194 = vadd.f32 0.0, %v2193
    %v2195 = vpop.f32.mrf.mxu0
    %2196 = vdwg.mxu0
    %v2198 = vsel %vm1930, %v1161, 0
    %v2201 = vsel %vm1930, %v1533, 0
    %2203 = vmatpush.bf16.xpose.msra.mxu0 0
    %2204 = vmatpush.bf16.xpose.msra.mxu0 0
    %2205 = vmatpush.bf16.xpose.msra.mxu0 0
    %2206 = vmatpush.bf16.xpose.msra.mxu0 0
    %2207 = vmatpush.bf16.xpose.msra.mxu0 0
    %2208 = vmatpush.bf16.xpose.msra.mxu0 0
    %2209 = vmatpush.bf16.xpose.msra.mxu0 0
    %2210 = vmatpush.bf16.xpose.msra.mxu0 %v2201
    %2211 = vmatmul.bf16.gmra.mxu0 %v2198
    %v2212 = vpop.f32.mrf.mxu0
    %v2213 = vadd.f32 0.0, %v2212
    %v2214 = vpop.f32.mrf.mxu0
    %2215 = vdwg.mxu0
    %v2217 = vsel %vm1930, %v1185, 0
    %v2220 = vsel %vm1930, %v1557, 0
    %2222 = vmatpush.bf16.xpose.msra.mxu0 0
    %2223 = vmatpush.bf16.xpose.msra.mxu0 0
    %2224 = vmatpush.bf16.xpose.msra.mxu0 0
    %2225 = vmatpush.bf16.xpose.msra.mxu0 0
    %2226 = vmatpush.bf16.xpose.msra.mxu0 0
    %2227 = vmatpush.bf16.xpose.msra.mxu0 0
    %2228 = vmatpush.bf16.xpose.msra.mxu0 0
    %2229 = vmatpush.bf16.xpose.msra.mxu0 %v2220
    %2230 = vmatmul.bf16.gmra.mxu0 %v2217
    %v2231 = vpop.f32.mrf.mxu0
    %v2232 = vadd.f32 0.0, %v2231
    %v2233 = vpop.f32.mrf.mxu0
    %2234 = vdwg.mxu0
    %vm2235 = vcmask 64512
    %v2236 = vsel %vm2235, %v1947, -inf
    %2237 = vmax.xlane.f32.xlu0 %v2236
    %v2238 = vpop.xlane.xlu0 %2237
    %v2239 = vsel %vm2235, %v1966, -inf
    %2240 = vmax.xlane.f32.xlu0 %v2239
    %v2241 = vpop.xlane.xlu0 %2240
    %v2242 = vsel %vm2235, %v1985, -inf
    %2243 = vmax.xlane.f32.xlu0 %v2242
    %v2244 = vpop.xlane.xlu0 %2243
    %v2245 = vsel %vm2235, %v2004, -inf
    %2246 = vmax.xlane.f32.xlu0 %v2245
    %v2247 = vpop.xlane.xlu0 %2246
    %v2248 = vsel %vm2235, %v2023, -inf
    %2249 = vmax.xlane.f32.xlu0 %v2248
    %v2250 = vpop.xlane.xlu0 %2249
    %v2251 = vsel %vm2235, %v2042, -inf
    %2252 = vmax.xlane.f32.xlu0 %v2251
    %v2253 = vpop.xlane.xlu0 %2252
    %v2254 = vsel %vm2235, %v2061, -inf
    %2255 = vmax.xlane.f32.xlu0 %v2254
    %v2256 = vpop.xlane.xlu0 %2255
    %v2257 = vsel %vm2235, %v2080, -inf
    %2258 = vmax.xlane.f32.xlu0 %v2257
    %v2259 = vpop.xlane.xlu0 %2258
    %v2260 = vsel %vm2235, %v2099, -inf
    %2261 = vmax.xlane.f32.xlu0 %v2260
    %v2262 = vpop.xlane.xlu0 %2261
    %v2263 = vsel %vm2235, %v2118, -inf
    %2264 = vmax.xlane.f32.xlu0 %v2263
    %v2265 = vpop.xlane.xlu0 %2264
    %v2266 = vsel %vm2235, %v2137, -inf
    %2267 = vmax.xlane.f32.xlu0 %v2266
    %v2268 = vpop.xlane.xlu0 %2267
    %v2269 = vsel %vm2235, %v2156, -inf
    %2270 = vmax.xlane.f32.xlu0 %v2269
    %v2271 = vpop.xlane.xlu0 %2270
    %v2272 = vsel %vm2235, %v2175, -inf
    %2273 = vmax.xlane.f32.xlu0 %v2272
    %v2274 = vpop.xlane.xlu0 %2273
    %v2275 = vsel %vm2235, %v2194, -inf
    %2276 = vmax.xlane.f32.xlu0 %v2275
    %v2277 = vpop.xlane.xlu0 %2276
    %v2278 = vsel %vm2235, %v2213, -inf
    %2279 = vmax.xlane.f32.xlu0 %v2278
    %v2280 = vpop.xlane.xlu0 %2279
    %v2281 = vsel %vm2235, %v2232, -inf
    %2282 = vmax.xlane.f32.xlu0 %v2281
    %v2283 = vpop.xlane.xlu0 %2282
    %v2284 = vsub.f32 %v1947, %v2238
    %v2285 = vsub.f32 %v1966, %v2241
    %v2286 = vsub.f32 %v1985, %v2244
    %v2287 = vsub.f32 %v2004, %v2247
    %v2288 = vsub.f32 %v2023, %v2250
    %v2289 = vsub.f32 %v2042, %v2253
    %v2290 = vsub.f32 %v2061, %v2256
    %v2291 = vsub.f32 %v2080, %v2259
    %v2292 = vsub.f32 %v2099, %v2262
    %v2293 = vsub.f32 %v2118, %v2265
    %v2294 = vsub.f32 %v2137, %v2268
    %v2295 = vsub.f32 %v2156, %v2271
    %v2296 = vsub.f32 %v2175, %v2274
    %v2297 = vsub.f32 %v2194, %v2277
    %v2298 = vsub.f32 %v2213, %v2280
    %v2299 = vsub.f32 %v2232, %v2283
    %v2300 = vmul.f32 %v2284, 1.442695
    %v2301 = vpow.pop %v2300
    %v2302 = vmul.f32 %v2285, 1.442695
    %v2303 = vpow.pop %v2302
    %v2304 = vmul.f32 %v2286, 1.442695
    %v2305 = vpow.pop %v2304
    %v2306 = vmul.f32 %v2287, 1.442695
    %v2307 = vpow.pop %v2306
    %v2308 = vmul.f32 %v2288, 1.442695
    %v2309 = vpow.pop %v2308
    %v2310 = vmul.f32 %v2289, 1.442695
    %v2311 = vpow.pop %v2310
    %v2312 = vmul.f32 %v2290, 1.442695
    %v2313 = vpow.pop %v2312
    %v2314 = vmul.f32 %v2291, 1.442695
    %v2315 = vpow.pop %v2314
    %v2316 = vmul.f32 %v2292, 1.442695
    %v2317 = vpow.pop %v2316
    %v2318 = vmul.f32 %v2293, 1.442695
    %v2319 = vpow.pop %v2318
    %v2320 = vmul.f32 %v2294, 1.442695
    %v2321 = vpow.pop %v2320
    %v2322 = vmul.f32 %v2295, 1.442695
    %v2323 = vpow.pop %v2322
    %v2324 = vmul.f32 %v2296, 1.442695
    %v2325 = vpow.pop %v2324
    %v2326 = vmul.f32 %v2297, 1.442695
    %v2327 = vpow.pop %v2326
    %v2328 = vmul.f32 %v2298, 1.442695
    %v2329 = vpow.pop %v2328
    %v2330 = vmul.f32 %v2299, 1.442695
    %v2331 = vpow.pop %v2330
    %v2332 = vsel %vm2235, %v2301, 0.0
    %2333 = vadd.xlane.f32.xlu0 %v2332
    %v2334 = vpop.xlane.xlu0 %2333
    %v2335 = vsel %vm2235, %v2303, 0.0
    %2336 = vadd.xlane.f32.xlu0 %v2335
    %v2337 = vpop.xlane.xlu0 %2336
    %v2338 = vsel %vm2235, %v2305, 0.0
    %2339 = vadd.xlane.f32.xlu0 %v2338
    %v2340 = vpop.xlane.xlu0 %2339
    %v2341 = vsel %vm2235, %v2307, 0.0
    %2342 = vadd.xlane.f32.xlu0 %v2341
    %v2343 = vpop.xlane.xlu0 %2342
    %v2344 = vsel %vm2235, %v2309, 0.0
    %2345 = vadd.xlane.f32.xlu0 %v2344
    %v2346 = vpop.xlane.xlu0 %2345
    %v2347 = vsel %vm2235, %v2311, 0.0
    %2348 = vadd.xlane.f32.xlu0 %v2347
    %v2349 = vpop.xlane.xlu0 %2348
    %v2350 = vsel %vm2235, %v2313, 0.0
    %2351 = vadd.xlane.f32.xlu0 %v2350
    %v2352 = vpop.xlane.xlu0 %2351
    %v2353 = vsel %vm2235, %v2315, 0.0
    %2354 = vadd.xlane.f32.xlu0 %v2353
    %v2355 = vpop.xlane.xlu0 %2354
    %v2356 = vsel %vm2235, %v2317, 0.0
    %2357 = vadd.xlane.f32.xlu0 %v2356
    %v2358 = vpop.xlane.xlu0 %2357
    %v2359 = vsel %vm2235, %v2319, 0.0
    %2360 = vadd.xlane.f32.xlu0 %v2359
    %v2361 = vpop.xlane.xlu0 %2360
    %v2362 = vsel %vm2235, %v2321, 0.0
    %2363 = vadd.xlane.f32.xlu0 %v2362
    %v2364 = vpop.xlane.xlu0 %2363
    %v2365 = vsel %vm2235, %v2323, 0.0
    %2366 = vadd.xlane.f32.xlu0 %v2365
    %v2367 = vpop.xlane.xlu0 %2366
    %v2368 = vsel %vm2235, %v2325, 0.0
    %2369 = vadd.xlane.f32.xlu0 %v2368
    %v2370 = vpop.xlane.xlu0 %2369
    %v2371 = vsel %vm2235, %v2327, 0.0
    %2372 = vadd.xlane.f32.xlu0 %v2371
    %v2373 = vpop.xlane.xlu0 %2372
    %v2374 = vsel %vm2235, %v2329, 0.0
    %2375 = vadd.xlane.f32.xlu0 %v2374
    %v2376 = vpop.xlane.xlu0 %2375
    %v2377 = vsel %vm2235, %v2331, 0.0
    %2378 = vadd.xlane.f32.xlu0 %v2377
    %v2379 = vpop.xlane.xlu0 %2378
    %v2380 = vrcp.pop %v2334
    %v2381 = vrcp.pop %v2337
    %v2382 = vrcp.pop %v2340
    %v2383 = vrcp.pop %v2343
    %v2384 = vrcp.pop %v2346
    %v2385 = vrcp.pop %v2349
    %v2386 = vrcp.pop %v2352
    %v2387 = vrcp.pop %v2355
    %v2388 = vrcp.pop %v2358
    %v2389 = vrcp.pop %v2361
    %v2390 = vrcp.pop %v2364
    %v2391 = vrcp.pop %v2367
    %v2392 = vrcp.pop %v2370
    %v2393 = vrcp.pop %v2373
    %v2394 = vrcp.pop %v2376
    %v2395 = vrcp.pop %v2379
    %v2396 = vmul.f32 %v2301, %v2380
    %v2397 = vmul.f32 %v2303, %v2381
    %v2398 = vmul.f32 %v2305, %v2382
    %v2399 = vmul.f32 %v2307, %v2383
    %v2400 = vmul.f32 %v2309, %v2384
    %v2401 = vmul.f32 %v2311, %v2385
    %v2402 = vmul.f32 %v2313, %v2386
    %v2403 = vmul.f32 %v2315, %v2387
    %v2404 = vmul.f32 %v2317, %v2388
    %v2405 = vmul.f32 %v2319, %v2389
    %v2406 = vmul.f32 %v2321, %v2390
    %v2407 = vmul.f32 %v2323, %v2391
    %v2408 = vmul.f32 %v2325, %v2392
    %v2409 = vmul.f32 %v2327, %v2393
    %v2410 = vmul.f32 %v2329, %v2394
    %v2411 = vmul.f32 %v2331, %v2395
    %v2412 = vpack.c.bf16 %v2396, %v2396
    %v2413 = vpack.c.bf16 %v2397, %v2397
    %v2414 = vpack.c.bf16 %v2398, %v2398
    %v2415 = vpack.c.bf16 %v2399, %v2399
    %v2416 = vpack.c.bf16 %v2400, %v2400
    %v2417 = vpack.c.bf16 %v2401, %v2401
    %v2418 = vpack.c.bf16 %v2402, %v2402
    %v2419 = vpack.c.bf16 %v2403, %v2403
    %v2420 = vpack.c.bf16 %v2404, %v2404
    %v2421 = vpack.c.bf16 %v2405, %v2405
    %v2422 = vpack.c.bf16 %v2406, %v2406
    %v2423 = vpack.c.bf16 %v2407, %v2407
    %v2424 = vpack.c.bf16 %v2408, %v2408
    %v2425 = vpack.c.bf16 %v2409, %v2409
    %v2426 = vpack.c.bf16 %v2410, %v2410
    %v2427 = vpack.c.bf16 %v2411, %v2411
    %v2429 = vsel %vm2235, %v2412, 0
    %vm2431 = vcmask 1043456
    %v2433 = vsel %vm2431, %v1884, 0
    %2435 = vmatpush.bf16.msra.mxu0 0
    %2436 = vmatpush.bf16.msra.mxu0 0
    %2437 = vmatpush.bf16.msra.mxu0 0
    %2438 = vmatpush.bf16.msra.mxu0 0
    %2439 = vmatpush.bf16.msra.mxu0 0
    %2440 = vmatpush.bf16.msra.mxu0 0
    %2441 = vmatpush.bf16.msra.mxu0 0
    %2442 = vmatpush.bf16.msra.mxu0 %v2433
    %2443 = vmatmul.bf16.gmra.mxu0 %v2429
    %v2444 = vpop.f32.mrf.mxu0
    %v2445 = vadd.f32 0.0, %v2444
    %v2446 = vpop.f32.mrf.mxu0
    %2447 = vdwg.mxu0
    %v2449 = vsel %vm2235, %v2413, 0
    %v2452 = vsel %vm2431, %v1908, 0
    %2454 = vmatpush.bf16.msra.mxu0 0
    %2455 = vmatpush.bf16.msra.mxu0 0
    %2456 = vmatpush.bf16.msra.mxu0 0
    %2457 = vmatpush.bf16.msra.mxu0 0
    %2458 = vmatpush.bf16.msra.mxu0 0
    %2459 = vmatpush.bf16.msra.mxu0 0
    %2460 = vmatpush.bf16.msra.mxu0 0
    %2461 = vmatpush.bf16.msra.mxu0 %v2452
    %2462 = vmatmul.bf16.gmra.mxu0 %v2449
    %v2463 = vpop.f32.mrf.mxu0
    %v2464 = vadd.f32 0.0, %v2463
    %v2465 = vpop.f32.mrf.mxu0
    %2466 = vdwg.mxu0
    %v2468 = vsel %vm2235, %v2414, 0
    %v2471 = vsel %vm2431, %v1887, 0
    %2473 = vmatpush.bf16.msra.mxu0 0
    %2474 = vmatpush.bf16.msra.mxu0 0
    %2475 = vmatpush.bf16.msra.mxu0 0
    %2476 = vmatpush.bf16.msra.mxu0 0
    %2477 = vmatpush.bf16.msra.mxu0 0
    %2478 = vmatpush.bf16.msra.mxu0 0
    %2479 = vmatpush.bf16.msra.mxu0 0
    %2480 = vmatpush.bf16.msra.mxu0 %v2471
    %2481 = vmatmul.bf16.gmra.mxu0 %v2468
    %v2482 = vpop.f32.mrf.mxu0
    %v2483 = vadd.f32 0.0, %v2482
    %v2484 = vpop.f32.mrf.mxu0
    %2485 = vdwg.mxu0
    %v2487 = vsel %vm2235, %v2415, 0
    %v2490 = vsel %vm2431, %v1911, 0
    %2492 = vmatpush.bf16.msra.mxu0 0
    %2493 = vmatpush.bf16.msra.mxu0 0
    %2494 = vmatpush.bf16.msra.mxu0 0
    %2495 = vmatpush.bf16.msra.mxu0 0
    %2496 = vmatpush.bf16.msra.mxu0 0
    %2497 = vmatpush.bf16.msra.mxu0 0
    %2498 = vmatpush.bf16.msra.mxu0 0
    %2499 = vmatpush.bf16.msra.mxu0 %v2490
    %2500 = vmatmul.bf16.gmra.mxu0 %v2487
    %v2501 = vpop.f32.mrf.mxu0
    %v2502 = vadd.f32 0.0, %v2501
    %v2503 = vpop.f32.mrf.mxu0
    %2504 = vdwg.mxu0
    %v2506 = vsel %vm2235, %v2416, 0
    %v2509 = vsel %vm2431, %v1890, 0
    %2511 = vmatpush.bf16.msra.mxu0 0
    %2512 = vmatpush.bf16.msra.mxu0 0
    %2513 = vmatpush.bf16.msra.mxu0 0
    %2514 = vmatpush.bf16.msra.mxu0 0
    %2515 = vmatpush.bf16.msra.mxu0 0
    %2516 = vmatpush.bf16.msra.mxu0 0
    %2517 = vmatpush.bf16.msra.mxu0 0
    %2518 = vmatpush.bf16.msra.mxu0 %v2509
    %2519 = vmatmul.bf16.gmra.mxu0 %v2506
    %v2520 = vpop.f32.mrf.mxu0
    %v2521 = vadd.f32 0.0, %v2520
    %v2522 = vpop.f32.mrf.mxu0
    %2523 = vdwg.mxu0
    %v2525 = vsel %vm2235, %v2417, 0
    %v2528 = vsel %vm2431, %v1914, 0
    %2530 = vmatpush.bf16.msra.mxu0 0
    %2531 = vmatpush.bf16.msra.mxu0 0
    %2532 = vmatpush.bf16.msra.mxu0 0
    %2533 = vmatpush.bf16.msra.mxu0 0
    %2534 = vmatpush.bf16.msra.mxu0 0
    %2535 = vmatpush.bf16.msra.mxu0 0
    %2536 = vmatpush.bf16.msra.mxu0 0
    %2537 = vmatpush.bf16.msra.mxu0 %v2528
    %2538 = vmatmul.bf16.gmra.mxu0 %v2525
    %v2539 = vpop.f32.mrf.mxu0
    %v2540 = vadd.f32 0.0, %v2539
    %v2541 = vpop.f32.mrf.mxu0
    %2542 = vdwg.mxu0
    %v2544 = vsel %vm2235, %v2418, 0
    %v2547 = vsel %vm2431, %v1893, 0
    %2549 = vmatpush.bf16.msra.mxu0 0
    %2550 = vmatpush.bf16.msra.mxu0 0
    %2551 = vmatpush.bf16.msra.mxu0 0
    %2552 = vmatpush.bf16.msra.mxu0 0
    %2553 = vmatpush.bf16.msra.mxu0 0
    %2554 = vmatpush.bf16.msra.mxu0 0
    %2555 = vmatpush.bf16.msra.mxu0 0
    %2556 = vmatpush.bf16.msra.mxu0 %v2547
    %2557 = vmatmul.bf16.gmra.mxu0 %v2544
    %v2558 = vpop.f32.mrf.mxu0
    %v2559 = vadd.f32 0.0, %v2558
    %v2560 = vpop.f32.mrf.mxu0
    %2561 = vdwg.mxu0
    %v2563 = vsel %vm2235, %v2419, 0
    %v2566 = vsel %vm2431, %v1917, 0
    %2568 = vmatpush.bf16.msra.mxu0 0
    %2569 = vmatpush.bf16.msra.mxu0 0
    %2570 = vmatpush.bf16.msra.mxu0 0
    %2571 = vmatpush.bf16.msra.mxu0 0
    %2572 = vmatpush.bf16.msra.mxu0 0
    %2573 = vmatpush.bf16.msra.mxu0 0
    %2574 = vmatpush.bf16.msra.mxu0 0
    %2575 = vmatpush.bf16.msra.mxu0 %v2566
    %2576 = vmatmul.bf16.gmra.mxu0 %v2563
    %v2577 = vpop.f32.mrf.mxu0
    %v2578 = vadd.f32 0.0, %v2577
    %v2579 = vpop.f32.mrf.mxu0
    %2580 = vdwg.mxu0
    %v2582 = vsel %vm2235, %v2420, 0
    %v2585 = vsel %vm2431, %v1896, 0
    %2587 = vmatpush.bf16.msra.mxu0 0
    %2588 = vmatpush.bf16.msra.mxu0 0
    %2589 = vmatpush.bf16.msra.mxu0 0
    %2590 = vmatpush.bf16.msra.mxu0 0
    %2591 = vmatpush.bf16.msra.mxu0 0
    %2592 = vmatpush.bf16.msra.mxu0 0
    %2593 = vmatpush.bf16.msra.mxu0 0
    %2594 = vmatpush.bf16.msra.mxu0 %v2585
    %2595 = vmatmul.bf16.gmra.mxu0 %v2582
    %v2596 = vpop.f32.mrf.mxu0
    %v2597 = vadd.f32 0.0, %v2596
    %v2598 = vpop.f32.mrf.mxu0
    %2599 = vdwg.mxu0
    %v2601 = vsel %vm2235, %v2421, 0
    %v2604 = vsel %vm2431, %v1920, 0
    %2606 = vmatpush.bf16.msra.mxu0 0
    %2607 = vmatpush.bf16.msra.mxu0 0
    %2608 = vmatpush.bf16.msra.mxu0 0
    %2609 = vmatpush.bf16.msra.mxu0 0
    %2610 = vmatpush.bf16.msra.mxu0 0
    %2611 = vmatpush.bf16.msra.mxu0 0
    %2612 = vmatpush.bf16.msra.mxu0 0
    %2613 = vmatpush.bf16.msra.mxu0 %v2604
    %2614 = vmatmul.bf16.gmra.mxu0 %v2601
    %v2615 = vpop.f32.mrf.mxu0
    %v2616 = vadd.f32 0.0, %v2615
    %v2617 = vpop.f32.mrf.mxu0
    %2618 = vdwg.mxu0
    %v2620 = vsel %vm2235, %v2422, 0
    %v2623 = vsel %vm2431, %v1899, 0
    %2625 = vmatpush.bf16.msra.mxu0 0
    %2626 = vmatpush.bf16.msra.mxu0 0
    %2627 = vmatpush.bf16.msra.mxu0 0
    %2628 = vmatpush.bf16.msra.mxu0 0
    %2629 = vmatpush.bf16.msra.mxu0 0
    %2630 = vmatpush.bf16.msra.mxu0 0
    %2631 = vmatpush.bf16.msra.mxu0 0
    %2632 = vmatpush.bf16.msra.mxu0 %v2623
    %2633 = vmatmul.bf16.gmra.mxu0 %v2620
    %v2634 = vpop.f32.mrf.mxu0
    %v2635 = vadd.f32 0.0, %v2634
    %v2636 = vpop.f32.mrf.mxu0
    %2637 = vdwg.mxu0
    %v2639 = vsel %vm2235, %v2423, 0
    %v2642 = vsel %vm2431, %v1923, 0
    %2644 = vmatpush.bf16.msra.mxu0 0
    %2645 = vmatpush.bf16.msra.mxu0 0
    %2646 = vmatpush.bf16.msra.mxu0 0
    %2647 = vmatpush.bf16.msra.mxu0 0
    %2648 = vmatpush.bf16.msra.mxu0 0
    %2649 = vmatpush.bf16.msra.mxu0 0
    %2650 = vmatpush.bf16.msra.mxu0 0
    %2651 = vmatpush.bf16.msra.mxu0 %v2642
    %2652 = vmatmul.bf16.gmra.mxu0 %v2639
    %v2653 = vpop.f32.mrf.mxu0
    %v2654 = vadd.f32 0.0, %v2653
    %v2655 = vpop.f32.mrf.mxu0
    %2656 = vdwg.mxu0
    %v2658 = vsel %vm2235, %v2424, 0
    %v2661 = vsel %vm2431, %v1902, 0
    %2663 = vmatpush.bf16.msra.mxu0 0
    %2664 = vmatpush.bf16.msra.mxu0 0
    %2665 = vmatpush.bf16.msra.mxu0 0
    %2666 = vmatpush.bf16.msra.mxu0 0
    %2667 = vmatpush.bf16.msra.mxu0 0
    %2668 = vmatpush.bf16.msra.mxu0 0
    %2669 = vmatpush.bf16.msra.mxu0 0
    %2670 = vmatpush.bf16.msra.mxu0 %v2661
    %2671 = vmatmul.bf16.gmra.mxu0 %v2658
    %v2672 = vpop.f32.mrf.mxu0
    %v2673 = vadd.f32 0.0, %v2672
    %v2674 = vpop.f32.mrf.mxu0
    %2675 = vdwg.mxu0
    %v2677 = vsel %vm2235, %v2425, 0
    %v2680 = vsel %vm2431, %v1926, 0
    %2682 = vmatpush.bf16.msra.mxu0 0
    %2683 = vmatpush.bf16.msra.mxu0 0
    %2684 = vmatpush.bf16.msra.mxu0 0
    %2685 = vmatpush.bf16.msra.mxu0 0
    %2686 = vmatpush.bf16.msra.mxu0 0
    %2687 = vmatpush.bf16.msra.mxu0 0
    %2688 = vmatpush.bf16.msra.mxu0 0
    %2689 = vmatpush.bf16.msra.mxu0 %v2680
    %2690 = vmatmul.bf16.gmra.mxu0 %v2677
    %v2691 = vpop.f32.mrf.mxu0
    %v2692 = vadd.f32 0.0, %v2691
    %v2693 = vpop.f32.mrf.mxu0
    %2694 = vdwg.mxu0
    %v2696 = vsel %vm2235, %v2426, 0
    %v2699 = vsel %vm2431, %v1905, 0
    %2701 = vmatpush.bf16.msra.mxu0 0
    %2702 = vmatpush.bf16.msra.mxu0 0
    %2703 = vmatpush.bf16.msra.mxu0 0
    %2704 = vmatpush.bf16.msra.mxu0 0
    %2705 = vmatpush.bf16.msra.mxu0 0
    %2706 = vmatpush.bf16.msra.mxu0 0
    %2707 = vmatpush.bf16.msra.mxu0 0
    %2708 = vmatpush.bf16.msra.mxu0 %v2699
    %2709 = vmatmul.bf16.gmra.mxu0 %v2696
    %v2710 = vpop.f32.mrf.mxu0
    %v2711 = vadd.f32 0.0, %v2710
    %v2712 = vpop.f32.mrf.mxu0
    %2713 = vdwg.mxu0
    %v2715 = vsel %vm2235, %v2427, 0
    %v2718 = vsel %vm2431, %v1929, 0
    %2720 = vmatpush.bf16.msra.mxu0 0
    %2721 = vmatpush.bf16.msra.mxu0 0
    %2722 = vmatpush.bf16.msra.mxu0 0
    %2723 = vmatpush.bf16.msra.mxu0 0
    %2724 = vmatpush.bf16.msra.mxu0 0
    %2725 = vmatpush.bf16.msra.mxu0 0
    %2726 = vmatpush.bf16.msra.mxu0 0
    %2727 = vmatpush.bf16.msra.mxu0 %v2718
    %2728 = vmatmul.bf16.gmra.mxu0 %v2715
    %v2729 = vpop.f32.mrf.mxu0
    %v2730 = vadd.f32 0.0, %v2729
    %v2731 = vpop.f32.mrf.mxu0
    %2732 = vdwg.mxu0
    %v2733 = vpack.c.bf16 %v2445, %v2445
    %v2734 = vpack.c.bf16 %v2464, %v2464
    %v2735 = vpack.c.bf16 %v2483, %v2483
    %v2736 = vpack.c.bf16 %v2502, %v2502
    %v2737 = vpack.c.bf16 %v2521, %v2521
    %v2738 = vpack.c.bf16 %v2540, %v2540
    %v2739 = vpack.c.bf16 %v2559, %v2559
    %v2740 = vpack.c.bf16 %v2578, %v2578
    %v2741 = vpack.c.bf16 %v2597, %v2597
    %v2742 = vpack.c.bf16 %v2616, %v2616
    %v2743 = vpack.c.bf16 %v2635, %v2635
    %v2744 = vpack.c.bf16 %v2654, %v2654
    %v2745 = vpack.c.bf16 %v2673, %v2673
    %v2746 = vpack.c.bf16 %v2692, %v2692
    %v2747 = vpack.c.bf16 %v2711, %v2711
    %v2748 = vpack.c.bf16 %v2730, %v2730
    %v2749 = vld [vmem:[#allocation7] sm:$0xf]
    %v2750 = vld [vmem:[#allocation7 + $0x4] sm:$0xf]
    %v2751 = vld [vmem:[#allocation7 + $0x8] sm:$0xf]
    %v2752 = vld [vmem:[#allocation7 + $0xc] sm:$0xf]
    %v2753 = vld [vmem:[#allocation7 + $0x10] sm:$0xf]
    %v2754 = vld [vmem:[#allocation7 + $0x14] sm:$0xf]
    %v2755 = vld [vmem:[#allocation7 + $0x18] sm:$0xf]
    %v2756 = vld [vmem:[#allocation7 + $0x1c] sm:$0xf]
    %v2757 = vld [vmem:[#allocation7 + $0x20] sm:$0xf]
    %v2758 = vld [vmem:[#allocation7 + $0x24] sm:$0xf]
    %v2759 = vld [vmem:[#allocation7 + $0x28] sm:$0xf]
    %v2760 = vld [vmem:[#allocation7 + $0x2c] sm:$0xf]
    %v2761 = vld [vmem:[#allocation7 + $0x30] sm:$0xf]
    %v2762 = vld [vmem:[#allocation7 + $0x34] sm:$0xf]
    %v2763 = vld [vmem:[#allocation7 + $0x38] sm:$0xf]
    %v2764 = vld [vmem:[#allocation7 + $0x3c] sm:$0xf]
    %v2765 = vld [vmem:[#allocation7 + $0x40] sm:$0xf]
    %v2766 = vld [vmem:[#allocation7 + $0x44] sm:$0xf]
    %v2767 = vld [vmem:[#allocation7 + $0x48] sm:$0xf]
    %v2768 = vld [vmem:[#allocation7 + $0x4c] sm:$0xf]
    %v2769 = vld [vmem:[#allocation7 + $0x50] sm:$0xf]
    %v2770 = vld [vmem:[#allocation7 + $0x54] sm:$0xf]
    %v2771 = vld [vmem:[#allocation7 + $0x58] sm:$0xf]
    %v2772 = vld [vmem:[#allocation7 + $0x5c] sm:$0xf]
    %v2773 = vld [vmem:[#allocation7 + $0x60] sm:$0xf]
    %v2774 = vld [vmem:[#allocation7 + $0x64] sm:$0xf]
    %v2775 = vld [vmem:[#allocation7 + $0x68] sm:$0xf]
    %v2776 = vld [vmem:[#allocation7 + $0x6c] sm:$0xf]
    %v2777 = vld [vmem:[#allocation7 + $0x70] sm:$0xf]
    %v2778 = vld [vmem:[#allocation7 + $0x74] sm:$0xf]
    %v2779 = vld [vmem:[#allocation7 + $0x78] sm:$0xf]
    %v2780 = vld [vmem:[#allocation7 + $0x7c] sm:$0xf]
    %v2781 = vld [vmem:[#allocation7 + $0x80] sm:$0xf]
    %v2782 = vld [vmem:[#allocation7 + $0x84] sm:$0xf]
    %v2783 = vld [vmem:[#allocation7 + $0x88] sm:$0xf]
    %v2784 = vld [vmem:[#allocation7 + $0x8c] sm:$0xf]
    %v2785 = vld [vmem:[#allocation7 + $0x90] sm:$0xf]
    %v2786 = vld [vmem:[#allocation7 + $0x94] sm:$0xf]
    %v2787 = vld [vmem:[#allocation7 + $0x98] sm:$0xf]
    %v2788 = vld [vmem:[#allocation7 + $0x9c] sm:$0xf]
    %v2789 = vld [vmem:[#allocation7 + $0xa0] sm:$0xf]
    %v2790 = vld [vmem:[#allocation7 + $0xa4] sm:$0xf]
    %v2791 = vld [vmem:[#allocation7 + $0xa8] sm:$0xf]
    %v2792 = vld [vmem:[#allocation7 + $0xac] sm:$0xf]
    %v2793 = vld [vmem:[#allocation7 + $0xb0] sm:$0xf]
    %v2794 = vld [vmem:[#allocation7 + $0xb4] sm:$0xf]
    %v2795 = vld [vmem:[#allocation7 + $0xb8] sm:$0xf]
    %v2796 = vld [vmem:[#allocation7 + $0xbc] sm:$0xf]
    %v2797 = vld [vmem:[#allocation7 + $0xc0] sm:$0xf]
    %v2798 = vld [vmem:[#allocation7 + $0xc4] sm:$0xf]
    %v2799 = vld [vmem:[#allocation7 + $0xc8] sm:$0xf]
    %v2800 = vld [vmem:[#allocation7 + $0xcc] sm:$0xf]
    %v2801 = vld [vmem:[#allocation7 + $0xd0] sm:$0xf]
    %v2802 = vld [vmem:[#allocation7 + $0xd4] sm:$0xf]
    %v2803 = vld [vmem:[#allocation7 + $0xd8] sm:$0xf]
    %v2804 = vld [vmem:[#allocation7 + $0xdc] sm:$0xf]
    %v2805 = vld [vmem:[#allocation7 + $0xe0] sm:$0xf]
    %v2806 = vld [vmem:[#allocation7 + $0xe4] sm:$0xf]
    %v2807 = vld [vmem:[#allocation7 + $0xe8] sm:$0xf]
    %v2808 = vld [vmem:[#allocation7 + $0xec] sm:$0xf]
    %v2809 = vld [vmem:[#allocation7 + $0xf0] sm:$0xf]
    %v2810 = vld [vmem:[#allocation7 + $0xf4] sm:$0xf]
    %v2811 = vld [vmem:[#allocation7 + $0xf8] sm:$0xf]
    %v2812 = vld [vmem:[#allocation7 + $0xfc] sm:$0xf]
    %v2815 = vunpack.c.l.b16 %v2733
    %v2816 = vunpack.c.l.b16 %v2734
    %v2817 = vpack.c.b16 %v2816, %v2815
    %v2826 = vunpack.c.l.b16 %v2749
    %v2827 = vunpack.c.l.b16 %v2750
    %v2828 = vunpack.c.l.b16 %v2751
    %v2829 = vunpack.c.l.b16 %v2752
    %v2830 = vunpack.c.l.b16 %v2753
    %v2831 = vunpack.c.l.b16 %v2754
    %v2832 = vunpack.c.l.b16 %v2755
    %v2833 = vunpack.c.l.b16 %v2756
    %v2834 = vpack.c.b16 %v2827, %v2826
    %v2835 = vpack.c.b16 %v2829, %v2828
    %v2836 = vpack.c.b16 %v2831, %v2830
    %v2837 = vpack.c.b16 %v2833, %v2832
    %v2843 = vsel %vm1930, %v2817, 0
    %2845 = vmatpush.bf16.msra.mxu0 0
    %2846 = vmatpush.bf16.msra.mxu0 0
    %2847 = vmatpush.bf16.msra.mxu0 0
    %2848 = vmatpush.bf16.msra.mxu0 0
    %2849 = vmatpush.bf16.msra.mxu0 %v2837
    %2850 = vmatpush.bf16.msra.mxu0 %v2836
    %2851 = vmatpush.bf16.msra.mxu0 %v2835
    %2852 = vmatpush.bf16.msra.mxu0 %v2834
    %2853 = vmatmul.bf16.gmra.mxu0 %v2843
    %v2854 = vpop.f32.mrf.mxu0
    %v2855 = vadd.f32 0.0, %v2854
    %v2856 = vpop.f32.mrf.mxu0
    %v2857 = vadd.f32 0.0, %v2856
    %2858 = vdwg.mxu0
    %v2861 = vunpack.c.l.b16 %v2735
    %v2862 = vunpack.c.l.b16 %v2736
    %v2863 = vpack.c.b16 %v2862, %v2861
    %v2872 = vunpack.c.l.b16 %v2757
    %v2873 = vunpack.c.l.b16 %v2758
    %v2874 = vunpack.c.l.b16 %v2759
    %v2875 = vunpack.c.l.b16 %v2760
    %v2876 = vunpack.c.l.b16 %v2761
    %v2877 = vunpack.c.l.b16 %v2762
    %v2878 = vunpack.c.l.b16 %v2763
    %v2879 = vunpack.c.l.b16 %v2764
    %v2880 = vpack.c.b16 %v2873, %v2872
    %v2881 = vpack.c.b16 %v2875, %v2874
    %v2882 = vpack.c.b16 %v2877, %v2876
    %v2883 = vpack.c.b16 %v2879, %v2878
    %v2889 = vsel %vm1930, %v2863, 0
    %2891 = vmatpush.bf16.msra.mxu0 0
    %2892 = vmatpush.bf16.msra.mxu0 0
    %2893 = vmatpush.bf16.msra.mxu0 0
    %2894 = vmatpush.bf16.msra.mxu0 0
    %2895 = vmatpush.bf16.msra.mxu0 %v2883
    %2896 = vmatpush.bf16.msra.mxu0 %v2882
    %2897 = vmatpush.bf16.msra.mxu0 %v2881
    %2898 = vmatpush.bf16.msra.mxu0 %v2880
    %2899 = vmatmul.bf16.gmra.mxu0 %v2889
    %v2900 = vpop.f32.mrf.mxu0
    %v2901 = vadd.f32 0.0, %v2900
    %v2902 = vpop.f32.mrf.mxu0
    %v2903 = vadd.f32 0.0, %v2902
    %2904 = vdwg.mxu0
    %v2907 = vunpack.c.l.b16 %v2737
    %v2908 = vunpack.c.l.b16 %v2738
    %v2909 = vpack.c.b16 %v2908, %v2907
    %v2918 = vunpack.c.l.b16 %v2765
    %v2919 = vunpack.c.l.b16 %v2766
    %v2920 = vunpack.c.l.b16 %v2767
    %v2921 = vunpack.c.l.b16 %v2768
    %v2922 = vunpack.c.l.b16 %v2769
    %v2923 = vunpack.c.l.b16 %v2770
    %v2924 = vunpack.c.l.b16 %v2771
    %v2925 = vunpack.c.l.b16 %v2772
    %v2926 = vpack.c.b16 %v2919, %v2918
    %v2927 = vpack.c.b16 %v2921, %v2920
    %v2928 = vpack.c.b16 %v2923, %v2922
    %v2929 = vpack.c.b16 %v2925, %v2924
    %v2935 = vsel %vm1930, %v2909, 0
    %2937 = vmatpush.bf16.msra.mxu0 0
    %2938 = vmatpush.bf16.msra.mxu0 0
    %2939 = vmatpush.bf16.msra.mxu0 0
    %2940 = vmatpush.bf16.msra.mxu0 0
    %2941 = vmatpush.bf16.msra.mxu0 %v2929
    %2942 = vmatpush.bf16.msra.mxu0 %v2928
    %2943 = vmatpush.bf16.msra.mxu0 %v2927
    %2944 = vmatpush.bf16.msra.mxu0 %v2926
    %2945 = vmatmul.bf16.gmra.mxu0 %v2935
    %v2946 = vpop.f32.mrf.mxu0
    %v2947 = vadd.f32 0.0, %v2946
    %v2948 = vpop.f32.mrf.mxu0
    %v2949 = vadd.f32 0.0, %v2948
    %2950 = vdwg.mxu0
    %v2953 = vunpack.c.l.b16 %v2739
    %v2954 = vunpack.c.l.b16 %v2740
    %v2955 = vpack.c.b16 %v2954, %v2953
    %v2964 = vunpack.c.l.b16 %v2773
    %v2965 = vunpack.c.l.b16 %v2774
    %v2966 = vunpack.c.l.b16 %v2775
    %v2967 = vunpack.c.l.b16 %v2776
    %v2968 = vunpack.c.l.b16 %v2777
    %v2969 = vunpack.c.l.b16 %v2778
    %v2970 = vunpack.c.l.b16 %v2779
    %v2971 = vunpack.c.l.b16 %v2780
    %v2972 = vpack.c.b16 %v2965, %v2964
    %v2973 = vpack.c.b16 %v2967, %v2966
    %v2974 = vpack.c.b16 %v2969, %v2968
    %v2975 = vpack.c.b16 %v2971, %v2970
    %v2981 = vsel %vm1930, %v2955, 0
    %2983 = vmatpush.bf16.msra.mxu0 0
    %2984 = vmatpush.bf16.msra.mxu0 0
    %2985 = vmatpush.bf16.msra.mxu0 0
    %2986 = vmatpush.bf16.msra.mxu0 0
    %2987 = vmatpush.bf16.msra.mxu0 %v2975
    %2988 = vmatpush.bf16.msra.mxu0 %v2974
    %2989 = vmatpush.bf16.msra.mxu0 %v2973
    %2990 = vmatpush.bf16.msra.mxu0 %v2972
    %2991 = vmatmul.bf16.gmra.mxu0 %v2981
    %v2992 = vpop.f32.mrf.mxu0
    %v2993 = vadd.f32 0.0, %v2992
    %v2994 = vpop.f32.mrf.mxu0
    %v2995 = vadd.f32 0.0, %v2994
    %2996 = vdwg.mxu0
    %v2999 = vunpack.c.l.b16 %v2741
    %v3000 = vunpack.c.l.b16 %v2742
    %v3001 = vpack.c.b16 %v3000, %v2999
    %v3010 = vunpack.c.l.b16 %v2781
    %v3011 = vunpack.c.l.b16 %v2782
    %v3012 = vunpack.c.l.b16 %v2783
    %v3013 = vunpack.c.l.b16 %v2784
    %v3014 = vunpack.c.l.b16 %v2785
    %v3015 = vunpack.c.l.b16 %v2786
    %v3016 = vunpack.c.l.b16 %v2787
    %v3017 = vunpack.c.l.b16 %v2788
    %v3018 = vpack.c.b16 %v3011, %v3010
    %v3019 = vpack.c.b16 %v3013, %v3012
    %v3020 = vpack.c.b16 %v3015, %v3014
    %v3021 = vpack.c.b16 %v3017, %v3016
    %v3027 = vsel %vm1930, %v3001, 0
    %3029 = vmatpush.bf16.msra.mxu0 0
    %3030 = vmatpush.bf16.msra.mxu0 0
    %3031 = vmatpush.bf16.msra.mxu0 0
    %3032 = vmatpush.bf16.msra.mxu0 0
    %3033 = vmatpush.bf16.msra.mxu0 %v3021
    %3034 = vmatpush.bf16.msra.mxu0 %v3020
    %3035 = vmatpush.bf16.msra.mxu0 %v3019
    %3036 = vmatpush.bf16.msra.mxu0 %v3018
    %3037 = vmatmul.bf16.gmra.mxu0 %v3027
    %v3038 = vpop.f32.mrf.mxu0
    %v3039 = vadd.f32 0.0, %v3038
    %v3040 = vpop.f32.mrf.mxu0
    %v3041 = vadd.f32 0.0, %v3040
    %3042 = vdwg.mxu0
    %v3045 = vunpack.c.l.b16 %v2743
    %v3046 = vunpack.c.l.b16 %v2744
    %v3047 = vpack.c.b16 %v3046, %v3045
    %v3056 = vunpack.c.l.b16 %v2789
    %v3057 = vunpack.c.l.b16 %v2790
    %v3058 = vunpack.c.l.b16 %v2791
    %v3059 = vunpack.c.l.b16 %v2792
    %v3060 = vunpack.c.l.b16 %v2793
    %v3061 = vunpack.c.l.b16 %v2794
    %v3062 = vunpack.c.l.b16 %v2795
    %v3063 = vunpack.c.l.b16 %v2796
    %v3064 = vpack.c.b16 %v3057, %v3056
    %v3065 = vpack.c.b16 %v3059, %v3058
    %v3066 = vpack.c.b16 %v3061, %v3060
    %v3067 = vpack.c.b16 %v3063, %v3062
    %v3073 = vsel %vm1930, %v3047, 0
    %3075 = vmatpush.bf16.msra.mxu0 0
    %3076 = vmatpush.bf16.msra.mxu0 0
    %3077 = vmatpush.bf16.msra.mxu0 0
    %3078 = vmatpush.bf16.msra.mxu0 0
    %3079 = vmatpush.bf16.msra.mxu0 %v3067
    %3080 = vmatpush.bf16.msra.mxu0 %v3066
    %3081 = vmatpush.bf16.msra.mxu0 %v3065
    %3082 = vmatpush.bf16.msra.mxu0 %v3064
    %3083 = vmatmul.bf16.gmra.mxu0 %v3073
    %v3084 = vpop.f32.mrf.mxu0
    %v3085 = vadd.f32 0.0, %v3084
    %v3086 = vpop.f32.mrf.mxu0
    %v3087 = vadd.f32 0.0, %v3086
    %3088 = vdwg.mxu0
    %v3091 = vunpack.c.l.b16 %v2745
    %v3092 = vunpack.c.l.b16 %v2746
    %v3093 = vpack.c.b16 %v3092, %v3091
    %v3102 = vunpack.c.l.b16 %v2797
    %v3103 = vunpack.c.l.b16 %v2798
    %v3104 = vunpack.c.l.b16 %v2799
    %v3105 = vunpack.c.l.b16 %v2800
    %v3106 = vunpack.c.l.b16 %v2801
    %v3107 = vunpack.c.l.b16 %v2802
    %v3108 = vunpack.c.l.b16 %v2803
    %v3109 = vunpack.c.l.b16 %v2804
    %v3110 = vpack.c.b16 %v3103, %v3102
    %v3111 = vpack.c.b16 %v3105, %v3104
    %v3112 = vpack.c.b16 %v3107, %v3106
    %v3113 = vpack.c.b16 %v3109, %v3108
    %v3119 = vsel %vm1930, %v3093, 0
    %3121 = vmatpush.bf16.msra.mxu0 0
    %3122 = vmatpush.bf16.msra.mxu0 0
    %3123 = vmatpush.bf16.msra.mxu0 0
    %3124 = vmatpush.bf16.msra.mxu0 0
    %3125 = vmatpush.bf16.msra.mxu0 %v3113
    %3126 = vmatpush.bf16.msra.mxu0 %v3112
    %3127 = vmatpush.bf16.msra.mxu0 %v3111
    %3128 = vmatpush.bf16.msra.mxu0 %v3110
    %3129 = vmatmul.bf16.gmra.mxu0 %v3119
    %v3130 = vpop.f32.mrf.mxu0
    %v3131 = vadd.f32 0.0, %v3130
    %v3132 = vpop.f32.mrf.mxu0
    %v3133 = vadd.f32 0.0, %v3132
    %3134 = vdwg.mxu0
    %v3137 = vunpack.c.l.b16 %v2747
    %v3138 = vunpack.c.l.b16 %v2748
    %v3139 = vpack.c.b16 %v3138, %v3137
    %v3148 = vunpack.c.l.b16 %v2805
    %v3149 = vunpack.c.l.b16 %v2806
    %v3150 = vunpack.c.l.b16 %v2807
    %v3151 = vunpack.c.l.b16 %v2808
    %v3152 = vunpack.c.l.b16 %v2809
    %v3153 = vunpack.c.l.b16 %v2810
    %v3154 = vunpack.c.l.b16 %v2811
    %v3155 = vunpack.c.l.b16 %v2812
    %v3156 = vpack.c.b16 %v3149, %v3148
    %v3157 = vpack.c.b16 %v3151, %v3150
    %v3158 = vpack.c.b16 %v3153, %v3152
    %v3159 = vpack.c.b16 %v3155, %v3154
    %v3165 = vsel %vm1930, %v3139, 0
    %3167 = vmatpush.bf16.msra.mxu0 0
    %3168 = vmatpush.bf16.msra.mxu0 0
    %3169 = vmatpush.bf16.msra.mxu0 0
    %3170 = vmatpush.bf16.msra.mxu0 0
    %3171 = vmatpush.bf16.msra.mxu0 %v3159
    %3172 = vmatpush.bf16.msra.mxu0 %v3158
    %3173 = vmatpush.bf16.msra.mxu0 %v3157
    %3174 = vmatpush.bf16.msra.mxu0 %v3156
    %3175 = vmatmul.bf16.gmra.mxu0 %v3165
    %v3176 = vpop.f32.mrf.mxu0
    %v3177 = vadd.f32 0.0, %v3176
    %v3178 = vpop.f32.mrf.mxu0
    %v3179 = vadd.f32 0.0, %v3178
    %3180 = vdwg.mxu0
    %v3181 = vadd.f32 %v2855, %v2901
    %v3182 = vadd.f32 %v3181, %v2947
    %v3183 = vadd.f32 %v3182, %v2993
    %v3184 = vadd.f32 %v3183, %v3039
    %v3185 = vadd.f32 %v3184, %v3085
    %v3186 = vadd.f32 %v3185, %v3131
    %v3187 = vadd.f32 %v3186, %v3177
    %v3188 = vadd.f32 %v2857, %v2903
    %v3189 = vadd.f32 %v3188, %v2949
    %v3190 = vadd.f32 %v3189, %v2995
    %v3191 = vadd.f32 %v3190, %v3041
    %v3192 = vadd.f32 %v3191, %v3087
    %v3193 = vadd.f32 %v3192, %v3133
    %v3194 = vadd.f32 %v3193, %v3179
    %v3195 = vld [vmem:[%s3] sm:$0x1]
    %v3197 = vperm.slane %v3195, 0
    %v3199 = vadd.f32 %v3187, %v3197
    %v3200 = vadd.f32 %v3194, %v3197
    %3201 = vst [vmem:[#allocation8] sm:$0xff] %v3199
    %3202 = vst [vmem:[#allocation8 + $0x8] sm:$0xff] %v3200
    // Predicated region
    $region30: #{tpu_custom_call.1} parent=1 // pred_check
      _
    $region31: #{tpu_custom_call.1} parent=1 // pred_check_branch
      %3204 = sbr.rel (0) target = $region33
    $region32: #{tpu_custom_call.1} parent=1 // pred_region
      %3206 = vsyncadd [#allocation4], 0
      %s3207 = sshll.u32 [#allocation8], 4
      %s3208 = int_to_ptr.vmem [resolvable:$true] %s3207
      %s3209 = sshll.u32 %s4, 4
      %s3210 = int_to_ptr.hbm [resolvable:$true] %s3209
      %3215 = dma.vmem_to_hbm [thread:$0]  %s3208, 256, %s3210, [#allocation4], 128, 128, 8
    $region33: #{tpu_custom_call.1} parent=1 // pred_fallthru
      _
    // Predicated region
    $region34: #{tpu_custom_call.1} parent=1 // pred_check
      _
    $region35: #{tpu_custom_call.1} parent=1 // pred_check_branch
      %3217 = sbr.rel (0) target = $region37
    $region36: #{tpu_custom_call.1} parent=1 // pred_region
      %3219 = dma.done [#allocation4], 256
    $region37: #{tpu_custom_call.1} parent=1 // pred_fallthru
      _
    %3220 = vsyncpa [#allocation3], 1
    %3221 = vsyncpa [#allocation6], 1
    %3222 = vsyncpa [#allocation4], 1

</llo_original>
